<compile_context>
chip_gen: v6e
topology: v6e:2x2x1
jax: 0.10.0
libtpu: 0.0.40
codegen_flags: <defaults>
</compile_context>

<pallas_src>
import functools
import math

import jax
import jax.numpy as jnp
from jax.experimental import pallas as pl
from jax.experimental.pallas import tpu as pltpu


def _round_up(x: int, m: int) -> int:
    return ((x + m - 1) // m) * m


def _resident_spec(block_shape, index_map):
    """BlockSpec for a weight/bias whose index_map is constant across the grid.

    Such a block is resident; single-buffering it halves its VMEM footprint
    (matters for v5e's 16 MiB default scoped limit / v7x's 64 MiB physical).
    Falls back to the default (double-buffered) spec on JAX versions without
    pipeline_mode support.
    """
    if hasattr(pl, "Buffered"):
        try:
            return pl.BlockSpec(block_shape, index_map,
                                pipeline_mode=pl.Buffered(1))
        except TypeError:
            pass
    return pl.BlockSpec(block_shape, index_map)


# ----------------------------------------------------------------------------
# Linear (x @ W^T + b) kernel: row-tiled, pre-transposed weight resident in
# VMEM, lane-dense (multiple-of-128) output stores.
# ----------------------------------------------------------------------------
def _linear_bias_kernel(x_ref, wt_ref, b_ref, o_ref):
    # x_ref: (tm, d_in), wt_ref: (d_in, d_out) [pre-transposed], b_ref: (1, d_out)
    o_ref[...] = (
        jnp.dot(x_ref[...], wt_ref[...], preferred_element_type=jnp.float32)
        + b_ref[...]
    ).astype(o_ref.dtype)


def linear(x2d, wt, b2d, *, tm=512):
    """x2d: (N, d_in); wt: (d_in, d_out) pre-transposed weight; b2d: (1, d_out)."""
    n, d_in = x2d.shape
    d_out = wt.shape[1]

    # Large MXU/HBM-friendly row tile; cdiv + zero-pad instead of a hard assert.
    tm = max(8, min(tm, _round_up(n, 8)))
    n_pad = _round_up(n, tm)
    if n_pad != n:
        x2d = jnp.pad(x2d, ((0, n_pad - n), (0, 0)))

    itemsize = jnp.dtype(x2d.dtype).itemsize
    # x tile + out tile double-buffered, weight + bias single-buffered,
    # plus generous headroom for compiler internal scratch.
    vmem_limit = int((2 * tm * d_in + d_in * d_out + d_out + 2 * tm * d_out)
                     * itemsize * 1.5) + (8 << 20)

    out = pl.pallas_call(
        _linear_bias_kernel,
        out_shape=jax.ShapeDtypeStruct((n_pad, d_out), x2d.dtype),
        grid_spec=pltpu.PrefetchScalarGridSpec(
            num_scalar_prefetch=0,
            grid=(n_pad // tm,),
            in_specs=[
                pl.BlockSpec((tm, d_in), lambda i: (i, 0)),
                _resident_spec((d_in, d_out), lambda i: (0, 0)),
                _resident_spec((1, d_out), lambda i: (0, 0)),
            ],
            out_specs=pl.BlockSpec((tm, d_out), lambda i: (i, 0)),
        ),
        compiler_params=pltpu.CompilerParams(
            dimension_semantics=("parallel",),
            vmem_limit_bytes=vmem_limit),
    )(x2d, wt, b2d)
    return out if n_pad == n else out[:n]


# ----------------------------------------------------------------------------
# Flash-style attention kernel (online softmax).
#   * heads looped (unrolled) inside the kernel -> q/k/v consumed in natural
#     (b, s, d_model) layout, output written in merged-head (b, s, d_model)
#     layout; zero HBM transposes.
#   * sub_mask path skips fully-masked kv blocks (except for the last q-block).
#   * 1/sqrt(dim_k) is already folded into the q projection weights.
# ----------------------------------------------------------------------------
def _flash_attn_kernel(q_ref, k_ref, v_ref, o_ref, m_sc, l_sc, acc_sc, *,
                       num_heads, dk, apply_sub_mask, block_q, block_k,
                       num_q_blocks):
    qi = pl.program_id(1)
    ki = pl.program_id(2)
    nk = pl.num_programs(2)

    @pl.when(ki == 0)
    def _init():
        m_sc[...] = jnp.full(m_sc.shape, -jnp.inf, jnp.float32)
        l_sc[...] = jnp.zeros(l_sc.shape, jnp.float32)
        acc_sc[...] = jnp.zeros(acc_sc.shape, jnp.float32)

    def compute_body():
        if apply_sub_mask:
            # Broadcast iotas instead of two full (bq, bk) int32 tiles.
            q_ids = qi * block_q + jax.lax.broadcasted_iota(
                jnp.int32, (block_q, 1), 0)
            k_ids = ki * block_k + jax.lax.broadcasted_iota(
                jnp.int32, (1, block_k), 1)
            # Faithful to the reference: sub_mask is True where k <= q
            # (lower triangle INCLUDING the diagonal) and is filled with -1e9.
            neg_mask = k_ids <= q_ids                      # (bq, bk) via bcast

        q_all = q_ref[...]          # (block_q, d_model), already pre-scaled
        k_all = k_ref[...]          # (block_k, d_model)
        v_all = v_ref[...]          # (block_k, d_model)

        for h in range(num_heads):  # unrolled; d_model = h*64 so h is small
            sl = slice(h * dk, (h + 1) * dk)
            s = jax.lax.dot_general(q_all[:, sl], k_all[:, sl],
                                    (((1,), (1,)), ((), ())),
                                    preferred_element_type=jnp.float32)
            if apply_sub_mask:
                s = jnp.where(neg_mask, jnp.float32(-1e9), s)

            m_prev = m_sc[h]                                   # (bq, 1)
            m_new = jnp.maximum(m_prev, jnp.max(s, axis=-1, keepdims=True))
            alpha = jnp.exp(m_prev - m_new)
            p = jnp.exp(s - m_new)
            l_sc[h] = alpha * l_sc[h] + jnp.sum(p, axis=-1, keepdims=True)
            acc_sc[h] = alpha * acc_sc[h] + jnp.dot(
                p, v_all[:, sl], preferred_element_type=jnp.float32)
            m_sc[h] = m_new

    if apply_sub_mask:
        # Skip kv blocks where every key is masked (max k_id <= min q_id),
        # except for the last q-block: its last row (q = S-1) is fully masked
        # and its uniform-softmax result needs every kv block visited.
        fully_masked = ki * block_k + (block_k - 1) <= qi * block_q
        do_compute = jnp.logical_or(jnp.logical_not(fully_masked),
                                    qi == num_q_blocks - 1)
        pl.when(do_compute)(compute_body)
    else:
        compute_body()

    @pl.when(ki == nk - 1)
    def _finalize():
        parts = []
        for h in range(num_heads):
            inv_l = pl.reciprocal(l_sc[h], approx=False)   # exact; once/q-block
            parts.append(acc_sc[h] * inv_l)
        # Merged-head, lane-dense (d_model-wide) store.
        o_ref[...] = jnp.concatenate(parts, axis=-1).astype(o_ref.dtype)


def _pick_block(requested: int, s_len: int) -> int:
    blk = min(requested, s_len)
    if s_len % blk:
        blk = math.gcd(blk, s_len)
    if blk % 8 and blk != s_len:
        blk = s_len            # fall back to a full-length block
    # TODO(synk): ragged sequence lengths would need key padding + masking.
    return blk


def flash_attention(q_arr, k_arr, v_arr, *, num_heads, d_model, apply_sub_mask,
                    block_q=256, block_k=256, q_col=0, k_col=0, v_col=0):
    """q/k/v arrays: (b, s, d_model) or a shared packed (b, s, 3*d_model) array
    (column block selected by {q,k,v}_col).  Output: (b, s, d_model)."""
    b, s_len, _ = q_arr.shape
    dk = d_model // num_heads

    block_q = _pick_block(block_q, s_len)
    block_k = _pick_block(block_k, s_len)
    nq = s_len // block_q
    nk = s_len // block_k

    if apply_sub_mask and nk > 1:
        def kv_map(col):
            def im(bi, qi, ki):
                # First not-fully-masked kv block for this q block.
                first_live = jnp.maximum(
                    0, (qi * block_q - block_k + 1) // block_k + 1)
                # Clamp skipped steps to the first useful block so Pallas does
                # not issue redundant DMAs; never clamp for the last q-block.
                kv = jnp.where(qi == nq - 1, ki, jnp.maximum(ki, first_live))
                return (bi, kv, col)
            return im
    else:
        def kv_map(col):
            def im(bi, qi, ki):
                return (bi, ki, col)
            return im

    kernel = functools.partial(
        _flash_attn_kernel, num_heads=num_heads, dk=dk,
        apply_sub_mask=apply_sub_mask, block_q=block_q, block_k=block_k,
        num_q_blocks=nq)

    return pl.pallas_call(
        kernel,
        out_shape=jax.ShapeDtypeStruct((b, s_len, d_model), q_arr.dtype),
        grid_spec=pltpu.PrefetchScalarGridSpec(
            num_scalar_prefetch=0,
            grid=(b, nq, nk),
            in_specs=[
                pl.BlockSpec((None, block_q, d_model),
                             lambda bi, qi, ki: (bi, qi, q_col)),
                pl.BlockSpec((None, block_k, d_model), kv_map(k_col)),
                pl.BlockSpec((None, block_k, d_model), kv_map(v_col)),
            ],
            out_specs=pl.BlockSpec((None, block_q, d_model),
                                   lambda bi, qi, ki: (bi, qi, 0)),
            scratch_shapes=[
                pltpu.VMEM((num_heads, block_q, 1), jnp.float32),   # running max
                pltpu.VMEM((num_heads, block_q, 1), jnp.float32),   # running denom
                pltpu.VMEM((num_heads, block_q, dk), jnp.float32),  # running numerator
            ],
        ),
        compiler_params=pltpu.CompilerParams(
            dimension_semantics=("parallel", "parallel", "arbitrary")),
    )(q_arr, k_arr, v_arr)


# ----------------------------------------------------------------------------
# Module wrapper
# ----------------------------------------------------------------------------
def prepare_params(wq, bq, wk, bk, wv, bv, wo, bo, *, num_heads):
    """One-time prep: pre-transpose weights, fold 1/sqrt(dim_k) into the q
    projection, and build the fused QKV weight for the self-attention path."""
    d = wq.shape[1]
    dk = d // num_heads
    scale = 1.0 / math.sqrt(dk)
    wq_t = wq.T * scale
    bq_s = bq * scale
    return {
        "wq_t": wq_t, "bq": bq_s.reshape(1, d),
        "wk_t": wk.T, "bk": bk.reshape(1, d),
        "wv_t": wv.T, "bv": bv.reshape(1, d),
        "wo_t": wo.T, "bo": bo.reshape(1, d),
        "wqkv_t": jnp.concatenate([wq_t, wk.T, wv.T], axis=1),
        "bqkv": jnp.concatenate([bq_s, bk, bv]).reshape(1, 3 * d),
    }


def mha_forward(params, q, k, v, mask=None, *, num_heads,
                block_q=256, block_k=256, row_tile=512):
    b, s_len, d_model = q.shape
    n = b * s_len

    # Fused QKV projection when q/k/v are the same tensor (self-attention) and
    # the d_model column slices stay lane-dense (multiple of 128).
    fuse_qkv = (q is k) and (k is v) and (d_model % 128 == 0)

    if fuse_qkv:
        qkv = linear(q.reshape(n, d_model), params["wqkv_t"], params["bqkv"],
                     tm=row_tile).reshape(b, s_len, 3 * d_model)
        q_arr = k_arr = v_arr = qkv
        q_col, k_col, v_col = 0, 1, 2
    else:
        q_arr = linear(q.reshape(n, d_model), params["wq_t"], params["bq"],
                       tm=row_tile).reshape(b, s_len, d_model)
        k_arr = linear(k.reshape(n, d_model), params["wk_t"], params["bk"],
                       tm=row_tile).reshape(b, s_len, d_model)
        v_arr = linear(v.reshape(n, d_model), params["wv_t"], params["bv"],
                       tm=row_tile).reshape(b, s_len, d_model)
        q_col = k_col = v_col = 0

    # Faithful to the reference module: a provided mask is never applied inside
    # get_attn; the sub_mask fill happens only when mask is None.
    apply_sub_mask = mask is None
    # TODO(synk): attention-weight dropout (p=0.1, train mode) not implemented;
    # this matches module.eval() forward.
    ctx = flash_attention(q_arr, k_arr, v_arr,
                          num_heads=num_heads, d_model=d_model,
                          apply_sub_mask=apply_sub_mask,
                          block_q=block_q, block_k=block_k,
                          q_col=q_col, k_col=k_col, v_col=v_col)

    # ctx is already in merged-head (b, s, d_model) layout: no transpose needed.
    out = linear(ctx.reshape(n, d_model), params["wo_t"], params["bo"],
                 tm=row_tile)
    return out.reshape(b, s_len, d_model)


# ----------------------------------------------------------------------------
# Pure-JAX reference (mirrors the PyTorch module exactly) + smoke test
# ----------------------------------------------------------------------------
def mha_reference(q, k, v, weights, biases, num_heads, mask=None):
    b, s_len, d_model = q.shape
    dk = d_model // num_heads

    def lin(x, w, bb):
        return x @ w.T + bb

    qp, kp, vp = [
        lin(x, w, bb).reshape(b, s_len, num_heads, dk).transpose(0, 2, 1, 3)
        for x, w, bb in zip((q, k, v), weights[:3], biases[:3])
    ]
    attn = jnp.einsum("bhqd,bhkd->bhqk", qp, kp) / math.sqrt(dk)
    if mask is None:
        # torch: attn.masked_fill(sub_mask(S), -1e9); sub_mask True where k <= q.
        sub = jnp.triu(jnp.ones((s_len, s_len), jnp.int32), k=1) == 0
        attn = jnp.where(sub[None, None], jnp.float32(-1e9), attn)
    sattn = jax.nn.softmax(attn, axis=-1)
    ctx = jnp.einsum("bhqk,bhkd->bhqd", sattn, vp)
    ctx = ctx.transpose(0, 2, 1, 3).reshape(b, s_len, d_model)
    return lin(ctx, weights[3], biases[3])


if __name__ == "__main__":
    # Module constraint: d_model == h * 64.
    h, d_model = 2, 128
    batch, seq = 2, 8

    key = jax.random.PRNGKey(0)
    keys = jax.random.split(key, 12)
    bound = 1.0 / math.sqrt(d_model)   # nn.Linear default init range

    def init_linear(kw, kb):
        w = jax.random.uniform(kw, (d_model, d_model), jnp.float32, -bound, bound)
        bb = jax.random.uniform(kb, (d_model,), jnp.float32, -bound, bound)
        return w, bb

    (wq, bq), (wk, bk), (wv, bv), (wo, bo) = [
        init_linear(keys[2 * i], keys[2 * i + 1]) for i in range(4)
    ]
    params = prepare_params(wq, bq, wk, bk, wv, bv, wo, bo, num_heads=h)
    weights, biases = (wq, wk, wv, wo), (bq, bk, bv, bo)

    # 1) Self-attention, mask=None -> fused QKV projection + sub_mask path.
    x = jax.random.normal(keys[8], (batch, seq, d_model), jnp.float32)
    fwd_self = jax.jit(lambda p, xx: mha_forward(p, xx, xx, xx, num_heads=h))
    out = jax.block_until_ready(fwd_self(params, x))
    ref = mha_reference(x, x, x, weights, biases, h, mask=None)
    assert out.shape == (batch, seq, d_model)
    assert jnp.allclose(out, ref, atol=2e-3, rtol=2e-3), \
        float(jnp.max(jnp.abs(out - ref)))

    # 2) Cross-attention (distinct q/k/v) with a provided mask -> (faithful to
    #    the module) the mask is never applied; unfused projection path.
    q = jax.random.normal(keys[9], (batch, seq, d_model), jnp.float32)
    k = jax.random.normal(keys[10], (batch, seq, d_model), jnp.float32)
    v = jax.random.normal(keys[11], (batch, seq, d_model), jnp.float32)
    dummy_mask = jnp.ones((batch, seq, seq), jnp.float32)
    out2 = jax.block_until_ready(
        mha_forward(params, q, k, v, mask=dummy_mask, num_heads=h))
    ref2 = mha_reference(q, k, v, weights, biases, h, mask=dummy_mask)
    assert jnp.allclose(out2, ref2, atol=2e-3, rtol=2e-3), \
        float(jnp.max(jnp.abs(out2 - ref2)))

    # 3) Longer sequence with small attention blocks -> exercises the
    #    fully-masked kv-block skipping path (incl. the last-q-block carve-out).
    seq3 = 32
    x3 = jax.random.normal(keys[8], (batch, seq3, d_model), jnp.float32)
    out3 = jax.block_until_ready(
        mha_forward(params, x3, x3, x3, num_heads=h, block_q=8, block_k=8))
    ref3 = mha_reference(x3, x3, x3, weights, biases, h, mask=None)
    assert jnp.allclose(out3, ref3, atol=2e-3, rtol=2e-3), \
        float(jnp.max(jnp.abs(out3 - ref3)))

    print("KERNEL_OK")
</pallas_src>

<mosaic_0001>
module attributes {stable_mosaic.version = 11 : i64} {
  func.func @_linear_bias_kernel(%arg0: i32, %arg1: memref<16x128xf32, #tpu.memory_space<vmem>>, %arg2: memref<128x128xf32, #tpu.memory_space<vmem>>, %arg3: memref<1x128xf32, #tpu.memory_space<vmem>>, %arg4: memref<16x128xf32, #tpu.memory_space<vmem>>) attributes {dimension_semantics = [#tpu.dimension_semantics<parallel>], iteration_bounds = array<i64: 1>, scalar_prefetch = 0 : i64, scratch_operands = 0 : i64, tpu.core_type = #tpu.core_type<tc>, window_params = [{transform_indices = @transform_0, window_bounds = array<i64: 16, 128>}, {pipeline_mode = #tpu.pipeline_mode<synchronous>, transform_indices = @transform_1, window_bounds = array<i64: 128, 128>}, {pipeline_mode = #tpu.pipeline_mode<synchronous>, transform_indices = @transform_2, window_bounds = array<i64: 1, 128>}, {transform_indices = @transform_3, window_bounds = array<i64: 16, 128>}]} {
    %c0 = arith.constant 0 : index
    %c0_0 = arith.constant 0 : index
    %0 = vector.load %arg1[%c0, %c0_0] : memref<16x128xf32, #tpu.memory_space<vmem>>, vector<16x128xf32>
    %c0_1 = arith.constant 0 : index
    %c0_2 = arith.constant 0 : index
    %1 = vector.load %arg2[%c0_1, %c0_2] : memref<128x128xf32, #tpu.memory_space<vmem>>, vector<128x128xf32>
    %cst = arith.constant dense<0.000000e+00> : vector<16x128xf32>
    %2 = tpu.matmul %0, %1, %cst {dimension_numbers = #tpu.dot_dimension_numbers<[1], [0], [0], [1], [0, 0, 1, 1], [], []>} : vector<16x128xf32>, vector<128x128xf32>, vector<16x128xf32> -> vector<16x128xf32>
    %c0_3 = arith.constant 0 : index
    %c0_4 = arith.constant 0 : index
    %3 = vector.load %arg3[%c0_3, %c0_4] : memref<1x128xf32, #tpu.memory_space<vmem>>, vector<1x128xf32>
    %4 = vector.broadcast %3 : vector<1x128xf32> to vector<16x128xf32>
    %5 = arith.addf %2, %4 : vector<16x128xf32>
    %c0_5 = arith.constant 0 : index
    %c0_6 = arith.constant 0 : index
    %6 = vector.load %arg4[%c0_5, %c0_6] : memref<16x128xf32, #tpu.memory_space<vmem>>, vector<16x128xf32>
    tpu.vector_store %arg4[%c0_5, %c0_6], %5 {strides = array<i32>} : memref<16x128xf32, #tpu.memory_space<vmem>>, vector<16x128xf32>,
    return
  }
  func.func @transform_0(%arg0: i32) -> (i32, i32) {
    %c0_i32 = arith.constant 0 : i32
    %c0_i32_0 = arith.constant 0 : i32
    return %arg0, %c0_i32 : i32, i32
  }
  func.func @transform_1(%arg0: i32) -> (i32, i32) {
    %c0_i32 = arith.constant 0 : i32
    %c0_i32_0 = arith.constant 0 : i32
    %c0_i32_1 = arith.constant 0 : i32
    return %c0_i32, %c0_i32_0 : i32, i32
  }
  func.func @transform_2(%arg0: i32) -> (i32, i32) {
    %c0_i32 = arith.constant 0 : i32
    %c0_i32_0 = arith.constant 0 : i32
    %c0_i32_1 = arith.constant 0 : i32
    return %c0_i32, %c0_i32_0 : i32, i32
  }
  func.func @transform_3(%arg0: i32) -> (i32, i32) {
    %c0_i32 = arith.constant 0 : i32
    %c0_i32_0 = arith.constant 0 : i32
    return %arg0, %c0_i32 : i32, i32
  }
}

module attributes {stable_mosaic.version = 11 : i64} {
  func.func @_linear_bias_kernel(%arg0: i32, %arg1: memref<16x128xf32, #tpu.memory_space<vmem>>, %arg2: memref<128x384xf32, #tpu.memory_space<vmem>>, %arg3: memref<1x384xf32, #tpu.memory_space<vmem>>, %arg4: memref<16x384xf32, #tpu.memory_space<vmem>>) attributes {dimension_semantics = [#tpu.dimension_semantics<parallel>], iteration_bounds = array<i64: 1>, scalar_prefetch = 0 : i64, scratch_operands = 0 : i64, tpu.core_type = #tpu.core_type<tc>, window_params = [{transform_indices = @transform_0, window_bounds = array<i64: 16, 128>}, {pipeline_mode = #tpu.pipeline_mode<synchronous>, transform_indices = @transform_1, window_bounds = array<i64: 128, 384>}, {pipeline_mode = #tpu.pipeline_mode<synchronous>, transform_indices = @transform_2, window_bounds = array<i64: 1, 384>}, {transform_indices = @transform_3, window_bounds = array<i64: 16, 384>}]} {
    %c0 = arith.constant 0 : index
    %c0_0 = arith.constant 0 : index
    %0 = vector.load %arg1[%c0, %c0_0] : memref<16x128xf32, #tpu.memory_space<vmem>>, vector<16x128xf32>
    %c0_1 = arith.constant 0 : index
    %c0_2 = arith.constant 0 : index
    %1 = vector.load %arg2[%c0_1, %c0_2] : memref<128x384xf32, #tpu.memory_space<vmem>>, vector<128x384xf32>
    %cst = arith.constant dense<0.000000e+00> : vector<16x384xf32>
    %2 = tpu.matmul %0, %1, %cst {dimension_numbers = #tpu.dot_dimension_numbers<[1], [0], [0], [1], [0, 0, 1, 1], [], []>} : vector<16x128xf32>, vector<128x384xf32>, vector<16x384xf32> -> vector<16x384xf32>
    %c0_3 = arith.constant 0 : index
    %c0_4 = arith.constant 0 : index
    %3 = vector.load %arg3[%c0_3, %c0_4] : memref<1x384xf32, #tpu.memory_space<vmem>>, vector<1x384xf32>
    %4 = vector.broadcast %3 : vector<1x384xf32> to vector<16x384xf32>
    %5 = arith.addf %2, %4 : vector<16x384xf32>
    %c0_5 = arith.constant 0 : index
    %c0_6 = arith.constant 0 : index
    %6 = vector.load %arg4[%c0_5, %c0_6] : memref<16x384xf32, #tpu.memory_space<vmem>>, vector<16x384xf32>
    tpu.vector_store %arg4[%c0_5, %c0_6], %5 {strides = array<i32>} : memref<16x384xf32, #tpu.memory_space<vmem>>, vector<16x384xf32>,
    return
  }
  func.func @transform_0(%arg0: i32) -> (i32, i32) {
    %c0_i32 = arith.constant 0 : i32
    %c0_i32_0 = arith.constant 0 : i32
    return %arg0, %c0_i32 : i32, i32
  }
  func.func @transform_1(%arg0: i32) -> (i32, i32) {
    %c0_i32 = arith.constant 0 : i32
    %c0_i32_0 = arith.constant 0 : i32
    %c0_i32_1 = arith.constant 0 : i32
    return %c0_i32, %c0_i32_0 : i32, i32
  }
  func.func @transform_2(%arg0: i32) -> (i32, i32) {
    %c0_i32 = arith.constant 0 : i32
    %c0_i32_0 = arith.constant 0 : i32
    %c0_i32_1 = arith.constant 0 : i32
    return %c0_i32, %c0_i32_0 : i32, i32
  }
  func.func @transform_3(%arg0: i32) -> (i32, i32) {
    %c0_i32 = arith.constant 0 : i32
    %c0_i32_0 = arith.constant 0 : i32
    return %arg0, %c0_i32 : i32, i32
  }
}

module attributes {stable_mosaic.version = 11 : i64} {
  func.func @_flash_attn_kernel(%arg0: i32, %arg1: i32, %arg2: i32, %arg3: memref<1x8x128xf32, #tpu.memory_space<vmem>>, %arg4: memref<1x8x128xf32, #tpu.memory_space<vmem>>, %arg5: memref<1x8x128xf32, #tpu.memory_space<vmem>>, %arg6: memref<1x8x128xf32, #tpu.memory_space<vmem>>, %arg7: memref<2x8x1xf32, #tpu.memory_space<vmem>>, %arg8: memref<2x8x1xf32, #tpu.memory_space<vmem>>, %arg9: memref<2x8x64xf32, #tpu.memory_space<vmem>>) attributes {dimension_semantics = [#tpu.dimension_semantics<parallel>, #tpu.dimension_semantics<parallel>, #tpu.dimension_semantics<arbitrary>], iteration_bounds = array<i64: 2, 1, 1>, scalar_prefetch = 0 : i64, scratch_operands = 3 : i64, tpu.core_type = #tpu.core_type<tc>, window_params = [{transform_indices = @transform_0, window_bounds = array<i64: 1, 8, 128>}, {transform_indices = @transform_1, window_bounds = array<i64: 1, 8, 128>}, {transform_indices = @transform_2, window_bounds = array<i64: 1, 8, 128>}, {transform_indices = @transform_3, window_bounds = array<i64: 1, 8, 128>}]} {
    %c0_i32 = arith.constant 0 : i32
    %0 = arith.cmpi eq, %arg2, %c0_i32 : i32
    %1 = arith.extui %0 : i1 to i32
    %c0_i32_0 = arith.constant 0 : i32
    %2 = arith.cmpi ne, %1, %c0_i32_0 : i32
    scf.if %2 {
      %cst = arith.constant 0xFF800000 : f32
      %15 = vector.broadcast %cst : f32 to vector<2x8x1xf32>
      %c0 = arith.constant 0 : index
      %c0_6 = arith.constant 0 : index
      %c0_7 = arith.constant 0 : index
      %16 = vector.load %arg7[%c0, %c0_6, %c0_7] : memref<2x8x1xf32, #tpu.memory_space<vmem>>, vector<2x8x1xf32>
      tpu.vector_store %arg7[%c0, %c0_6, %c0_7], %15 {strides = array<i32>} : memref<2x8x1xf32, #tpu.memory_space<vmem>>, vector<2x8x1xf32>,
      %cst_8 = arith.constant 0.000000e+00 : f32
      %17 = vector.broadcast %cst_8 : f32 to vector<2x8x1xf32>
      %c0_9 = arith.constant 0 : index
      %c0_10 = arith.constant 0 : index
      %c0_11 = arith.constant 0 : index
      %18 = vector.load %arg8[%c0_9, %c0_10, %c0_11] : memref<2x8x1xf32, #tpu.memory_space<vmem>>, vector<2x8x1xf32>
      tpu.vector_store %arg8[%c0_9, %c0_10, %c0_11], %17 {strides = array<i32>} : memref<2x8x1xf32, #tpu.memory_space<vmem>>, vector<2x8x1xf32>,
      %cst_12 = arith.constant 0.000000e+00 : f32
      %19 = vector.broadcast %cst_12 : f32 to vector<2x8x64xf32>
      %c0_13 = arith.constant 0 : index
      %c0_14 = arith.constant 0 : index
      %c0_15 = arith.constant 0 : index
      %20 = vector.load %arg9[%c0_13, %c0_14, %c0_15] : memref<2x8x64xf32, #tpu.memory_space<vmem>>, vector<2x8x64xf32>
      tpu.vector_store %arg9[%c0_13, %c0_14, %c0_15], %19 {strides = array<i32>} : memref<2x8x64xf32, #tpu.memory_space<vmem>>, vector<2x8x64xf32>,
    } else {
    }
    %c8_i32 = arith.constant 8 : i32
    %3 = arith.muli %arg2, %c8_i32 : i32
    %c7_i32 = arith.constant 7 : i32
    %4 = arith.addi %3, %c7_i32 : i32
    %c8_i32_1 = arith.constant 8 : i32
    %5 = arith.muli %arg1, %c8_i32_1 : i32
    %6 = arith.cmpi sle, %4, %5 : i32
    %true = arith.constant true
    %7 = arith.xori %6, %true : i1
    %c0_i32_2 = arith.constant 0 : i32
    %8 = arith.cmpi eq, %arg1, %c0_i32_2 : i32
    %9 = arith.ori %7, %8 : i1
    %10 = arith.extui %9 : i1 to i32
    %c0_i32_3 = arith.constant 0 : i32
    %11 = arith.cmpi ne, %10, %c0_i32_3 : i32
    scf.if %11 {
      %c8_i32_6 = arith.constant 8 : i32
      %15 = arith.muli %arg1, %c8_i32_6 : i32
      %16 = tpu.iota {dimensions = array<i32: 0>} : vector<8x1xi32>
      %17 = vector.broadcast %15 : i32 to vector<8x1xi32>
      %18 = arith.addi %17, %16 : vector<8x1xi32>
      %c8_i32_7 = arith.constant 8 : i32
      %19 = arith.muli %arg2, %c8_i32_7 : i32
      %20 = tpu.iota {dimensions = array<i32: 1>} : vector<1x8xi32>
      %21 = vector.broadcast %19 : i32 to vector<1x8xi32>
      %22 = arith.addi %21, %20 : vector<1x8xi32>
      %23 = vector.broadcast %22 : vector<1x8xi32> to vector<8x8xi32>
      %24 = vector.broadcast %18 : vector<8x1xi32> to vector<8x8xi32>
      %25 = arith.cmpi sle, %23, %24 : vector<8x8xi32>
      %c0 = arith.constant 0 : index
      %c0_8 = arith.constant 0 : index
      %c0_9 = arith.constant 0 : index
      %26 = vector.load %arg3[%c0, %c0_8, %c0_9] : memref<1x8x128xf32, #tpu.memory_space<vmem>>, vector<1x8x128xf32>
      %27 = vector.shape_cast %26 : vector<1x8x128xf32> to vector<8x128xf32>
      %c0_10 = arith.constant 0 : index
      %c0_11 = arith.constant 0 : index
      %c0_12 = arith.constant 0 : index
      %28 = vector.load %arg4[%c0_10, %c0_11, %c0_12] : memref<1x8x128xf32, #tpu.memory_space<vmem>>, vector<1x8x128xf32>
      %29 = vector.shape_cast %28 : vector<1x8x128xf32> to vector<8x128xf32>
      %c0_13 = arith.constant 0 : index
      %c0_14 = arith.constant 0 : index
      %c0_15 = arith.constant 0 : index
      %30 = vector.load %arg5[%c0_13, %c0_14, %c0_15] : memref<1x8x128xf32, #tpu.memory_space<vmem>>, vector<1x8x128xf32>
      %31 = vector.shape_cast %30 : vector<1x8x128xf32> to vector<8x128xf32>
      %32 = vector.extract_strided_slice %27 {offsets = [0, 0], sizes = [8, 64], strides = [1, 1]} : vector<8x128xf32> to vector<8x64xf32>
      %33 = vector.extract_strided_slice %29 {offsets = [0, 0], sizes = [8, 64], strides = [1, 1]} : vector<8x128xf32> to vector<8x64xf32>
      %cst = arith.constant dense<0.000000e+00> : vector<8x8xf32>
      %34 = tpu.matmul %32, %33, %cst {dimension_numbers = #tpu.dot_dimension_numbers<[1], [1], [0], [0], [0, 0, 1, 0], [], []>} : vector<8x64xf32>, vector<8x64xf32>, vector<8x8xf32> -> vector<8x8xf32>
      %cst_16 = arith.constant -1.000000e+09 : f32
      %35 = vector.broadcast %cst_16 : f32 to vector<8x8xf32>
      %36 = arith.select %25, %35, %34 : vector<8x8xi1>, vector<8x8xf32>
      %c0_17 = arith.constant 0 : index
      %c0_18 = arith.constant 0 : index
      %c0_19 = arith.constant 0 : index
      %37 = vector.load %arg7[%c0_17, %c0_18, %c0_19] : memref<2x8x1xf32, #tpu.memory_space<vmem>>, vector<1x8x1xf32>
      %38 = vector.shape_cast %37 : vector<1x8x1xf32> to vector<8x1xf32>
      %cst_20 = arith.constant dense<0xFF800000> : vector<8xf32>
      %39 = vector.multi_reduction <maximumf>, %36, %cst_20 [1] : vector<8x8xf32> to vector<8xf32>
      %40 = vector.shape_cast %39 : vector<8xf32> to vector<8x1xf32>
      %41 = arith.maximumf %38, %40 : vector<8x1xf32>
      %42 = arith.subf %38, %41 : vector<8x1xf32>
      %43 = math.exp %42 : vector<8x1xf32>
      %44 = vector.broadcast %41 : vector<8x1xf32> to vector<8x8xf32>
      %45 = arith.subf %36, %44 : vector<8x8xf32>
      %46 = math.exp %45 : vector<8x8xf32>
      %c0_21 = arith.constant 0 : index
      %c0_22 = arith.constant 0 : index
      %c0_23 = arith.constant 0 : index
      %47 = vector.load %arg8[%c0_21, %c0_22, %c0_23] : memref<2x8x1xf32, #tpu.memory_space<vmem>>, vector<1x8x1xf32>
      %48 = vector.shape_cast %47 : vector<1x8x1xf32> to vector<8x1xf32>
      %49 = arith.mulf %43, %48 : vector<8x1xf32>
      %cst_24 = arith.constant dense<0.000000e+00> : vector<8xf32>
      %50 = vector.multi_reduction <add>, %46, %cst_24 [1] : vector<8x8xf32> to vector<8xf32>
      %51 = vector.shape_cast %50 : vector<8xf32> to vector<8x1xf32>
      %52 = arith.addf %49, %51 : vector<8x1xf32>
      %c0_25 = arith.constant 0 : index
      %c0_26 = arith.constant 0 : index
      %c0_27 = arith.constant 0 : index
      %53 = vector.load %arg8[%c0_25, %c0_26, %c0_27] : memref<2x8x1xf32, #tpu.memory_space<vmem>>, vector<1x8x1xf32>
      %54 = vector.shape_cast %53 : vector<1x8x1xf32> to vector<8x1xf32>
      %55 = vector.shape_cast %52 : vector<8x1xf32> to vector<1x8x1xf32>
      tpu.vector_store %arg8[%c0_25, %c0_26, %c0_27], %55 {strides = array<i32>} : memref<2x8x1xf32, #tpu.memory_space<vmem>>, vector<1x8x1xf32>,
      %c0_28 = arith.constant 0 : index
      %c0_29 = arith.constant 0 : index
      %c0_30 = arith.constant 0 : index
      %56 = vector.load %arg9[%c0_28, %c0_29, %c0_30] : memref<2x8x64xf32, #tpu.memory_space<vmem>>, vector<1x8x64xf32>
      %57 = vector.shape_cast %56 : vector<1x8x64xf32> to vector<8x64xf32>
      %58 = vector.broadcast %43 : vector<8x1xf32> to vector<8x64xf32>
      %59 = arith.mulf %58, %57 : vector<8x64xf32>
      %60 = vector.extract_strided_slice %31 {offsets = [0, 0], sizes = [8, 64], strides = [1, 1]} : vector<8x128xf32> to vector<8x64xf32>
      %cst_31 = arith.constant dense<0.000000e+00> : vector<8x64xf32>
      %61 = tpu.matmul %46, %60, %cst_31 {dimension_numbers = #tpu.dot_dimension_numbers<[1], [0], [0], [1], [0, 0, 1, 1], [], []>} : vector<8x8xf32>, vector<8x64xf32>, vector<8x64xf32> -> vector<8x64xf32>
      %62 = arith.addf %59, %61 : vector<8x64xf32>
      %c0_32 = arith.constant 0 : index
      %c0_33 = arith.constant 0 : index
      %c0_34 = arith.constant 0 : index
      %63 = vector.load %arg9[%c0_32, %c0_33, %c0_34] : memref<2x8x64xf32, #tpu.memory_space<vmem>>, vector<1x8x64xf32>
      %64 = vector.shape_cast %63 : vector<1x8x64xf32> to vector<8x64xf32>
      %65 = vector.shape_cast %62 : vector<8x64xf32> to vector<1x8x64xf32>
      tpu.vector_store %arg9[%c0_32, %c0_33, %c0_34], %65 {strides = array<i32>} : memref<2x8x64xf32, #tpu.memory_space<vmem>>, vector<1x8x64xf32>,
      %c0_35 = arith.constant 0 : index
      %c0_36 = arith.constant 0 : index
      %c0_37 = arith.constant 0 : index
      %66 = vector.load %arg7[%c0_35, %c0_36, %c0_37] : memref<2x8x1xf32, #tpu.memory_space<vmem>>, vector<1x8x1xf32>
      %67 = vector.shape_cast %66 : vector<1x8x1xf32> to vector<8x1xf32>
      %68 = vector.shape_cast %41 : vector<8x1xf32> to vector<1x8x1xf32>
      tpu.vector_store %arg7[%c0_35, %c0_36, %c0_37], %68 {strides = array<i32>} : memref<2x8x1xf32, #tpu.memory_space<vmem>>, vector<1x8x1xf32>,
      %69 = vector.extract_strided_slice %27 {offsets = [0, 64], sizes = [8, 64], strides = [1, 1]} : vector<8x128xf32> to vector<8x64xf32>
      %70 = vector.extract_strided_slice %29 {offsets = [0, 64], sizes = [8, 64], strides = [1, 1]} : vector<8x128xf32> to vector<8x64xf32>
      %cst_38 = arith.constant dense<0.000000e+00> : vector<8x8xf32>
      %71 = tpu.matmul %69, %70, %cst_38 {dimension_numbers = #tpu.dot_dimension_numbers<[1], [1], [0], [0], [0, 0, 1, 0], [], []>} : vector<8x64xf32>, vector<8x64xf32>, vector<8x8xf32> -> vector<8x8xf32>
      %cst_39 = arith.constant -1.000000e+09 : f32
      %72 = vector.broadcast %cst_39 : f32 to vector<8x8xf32>
      %73 = arith.select %25, %72, %71 : vector<8x8xi1>, vector<8x8xf32>
      %c1 = arith.constant 1 : index
      %c0_40 = arith.constant 0 : index
      %c0_41 = arith.constant 0 : index
      %74 = vector.load %arg7[%c1, %c0_40, %c0_41] : memref<2x8x1xf32, #tpu.memory_space<vmem>>, vector<1x8x1xf32>
      %75 = vector.shape_cast %74 : vector<1x8x1xf32> to vector<8x1xf32>
      %cst_42 = arith.constant dense<0xFF800000> : vector<8xf32>
      %76 = vector.multi_reduction <maximumf>, %73, %cst_42 [1] : vector<8x8xf32> to vector<8xf32>
      %77 = vector.shape_cast %76 : vector<8xf32> to vector<8x1xf32>
      %78 = arith.maximumf %75, %77 : vector<8x1xf32>
      %79 = arith.subf %75, %78 : vector<8x1xf32>
      %80 = math.exp %79 : vector<8x1xf32>
      %81 = vector.broadcast %78 : vector<8x1xf32> to vector<8x8xf32>
      %82 = arith.subf %73, %81 : vector<8x8xf32>
      %83 = math.exp %82 : vector<8x8xf32>
      %c1_43 = arith.constant 1 : index
      %c0_44 = arith.constant 0 : index
      %c0_45 = arith.constant 0 : index
      %84 = vector.load %arg8[%c1_43, %c0_44, %c0_45] : memref<2x8x1xf32, #tpu.memory_space<vmem>>, vector<1x8x1xf32>
      %85 = vector.shape_cast %84 : vector<1x8x1xf32> to vector<8x1xf32>
      %86 = arith.mulf %80, %85 : vector<8x1xf32>
      %cst_46 = arith.constant dense<0.000000e+00> : vector<8xf32>
      %87 = vector.multi_reduction <add>, %83, %cst_46 [1] : vector<8x8xf32> to vector<8xf32>
      %88 = vector.shape_cast %87 : vector<8xf32> to vector<8x1xf32>
      %89 = arith.addf %86, %88 : vector<8x1xf32>
      %c1_47 = arith.constant 1 : index
      %c0_48 = arith.constant 0 : index
      %c0_49 = arith.constant 0 : index
      %90 = vector.load %arg8[%c1_47, %c0_48, %c0_49] : memref<2x8x1xf32, #tpu.memory_space<vmem>>, vector<1x8x1xf32>
      %91 = vector.shape_cast %90 : vector<1x8x1xf32> to vector<8x1xf32>
      %92 = vector.shape_cast %89 : vector<8x1xf32> to vector<1x8x1xf32>
      tpu.vector_store %arg8[%c1_47, %c0_48, %c0_49], %92 {strides = array<i32>} : memref<2x8x1xf32, #tpu.memory_space<vmem>>, vector<1x8x1xf32>,
      %c1_50 = arith.constant 1 : index
      %c0_51 = arith.constant 0 : index
      %c0_52 = arith.constant 0 : index
      %93 = vector.load %arg9[%c1_50, %c0_51, %c0_52] : memref<2x8x64xf32, #tpu.memory_space<vmem>>, vector<1x8x64xf32>
      %94 = vector.shape_cast %93 : vector<1x8x64xf32> to vector<8x64xf32>
      %95 = vector.broadcast %80 : vector<8x1xf32> to vector<8x64xf32>
      %96 = arith.mulf %95, %94 : vector<8x64xf32>
      %97 = vector.extract_strided_slice %31 {offsets = [0, 64], sizes = [8, 64], strides = [1, 1]} : vector<8x128xf32> to vector<8x64xf32>
      %cst_53 = arith.constant dense<0.000000e+00> : vector<8x64xf32>
      %98 = tpu.matmul %83, %97, %cst_53 {dimension_numbers = #tpu.dot_dimension_numbers<[1], [0], [0], [1], [0, 0, 1, 1], [], []>} : vector<8x8xf32>, vector<8x64xf32>, vector<8x64xf32> -> vector<8x64xf32>
      %99 = arith.addf %96, %98 : vector<8x64xf32>
      %c1_54 = arith.constant 1 : index
      %c0_55 = arith.constant 0 : index
      %c0_56 = arith.constant 0 : index
      %100 = vector.load %arg9[%c1_54, %c0_55, %c0_56] : memref<2x8x64xf32, #tpu.memory_space<vmem>>, vector<1x8x64xf32>
      %101 = vector.shape_cast %100 : vector<1x8x64xf32> to vector<8x64xf32>
      %102 = vector.shape_cast %99 : vector<8x64xf32> to vector<1x8x64xf32>
      tpu.vector_store %arg9[%c1_54, %c0_55, %c0_56], %102 {strides = array<i32>} : memref<2x8x64xf32, #tpu.memory_space<vmem>>, vector<1x8x64xf32>,
      %c1_57 = arith.constant 1 : index
      %c0_58 = arith.constant 0 : index
      %c0_59 = arith.constant 0 : index
      %103 = vector.load %arg7[%c1_57, %c0_58, %c0_59] : memref<2x8x1xf32, #tpu.memory_space<vmem>>, vector<1x8x1xf32>
      %104 = vector.shape_cast %103 : vector<1x8x1xf32> to vector<8x1xf32>
      %105 = vector.shape_cast %78 : vector<8x1xf32> to vector<1x8x1xf32>
      tpu.vector_store %arg7[%c1_57, %c0_58, %c0_59], %105 {strides = array<i32>} : memref<2x8x1xf32, #tpu.memory_space<vmem>>, vector<1x8x1xf32>,
    } else {
    }
    %c0_i32_4 = arith.constant 0 : i32
    %12 = arith.cmpi eq, %arg2, %c0_i32_4 : i32
    %13 = arith.extui %12 : i1 to i32
    %c0_i32_5 = arith.constant 0 : i32
    %14 = arith.cmpi ne, %13, %c0_i32_5 : i32
    scf.if %14 {
      %c0 = arith.constant 0 : index
      %c0_6 = arith.constant 0 : index
      %c0_7 = arith.constant 0 : index
      %15 = vector.load %arg8[%c0, %c0_6, %c0_7] : memref<2x8x1xf32, #tpu.memory_space<vmem>>, vector<1x8x1xf32>
      %16 = vector.shape_cast %15 : vector<1x8x1xf32> to vector<8x1xf32>
      %17 = tpu.reciprocal %16 : vector<8x1xf32> -> vector<8x1xf32>
      %c0_8 = arith.constant 0 : index
      %c0_9 = arith.constant 0 : index
      %c0_10 = arith.constant 0 : index
      %18 = vector.load %arg9[%c0_8, %c0_9, %c0_10] : memref<2x8x64xf32, #tpu.memory_space<vmem>>, vector<1x8x64xf32>
      %19 = vector.shape_cast %18 : vector<1x8x64xf32> to vector<8x64xf32>
      %20 = vector.broadcast %17 : vector<8x1xf32> to vector<8x64xf32>
      %21 = arith.mulf %19, %20 : vector<8x64xf32>
      %c1 = arith.constant 1 : index
      %c0_11 = arith.constant 0 : index
      %c0_12 = arith.constant 0 : index
      %22 = vector.load %arg8[%c1, %c0_11, %c0_12] : memref<2x8x1xf32, #tpu.memory_space<vmem>>, vector<1x8x1xf32>
      %23 = vector.shape_cast %22 : vector<1x8x1xf32> to vector<8x1xf32>
      %24 = tpu.reciprocal %23 : vector<8x1xf32> -> vector<8x1xf32>
      %c1_13 = arith.constant 1 : index
      %c0_14 = arith.constant 0 : index
      %c0_15 = arith.constant 0 : index
      %25 = vector.load %arg9[%c1_13, %c0_14, %c0_15] : memref<2x8x64xf32, #tpu.memory_space<vmem>>, vector<1x8x64xf32>
      %26 = vector.shape_cast %25 : vector<1x8x64xf32> to vector<8x64xf32>
      %27 = vector.broadcast %24 : vector<8x1xf32> to vector<8x64xf32>
      %28 = arith.mulf %26, %27 : vector<8x64xf32>
      %29 = tpu.concatenate %21, %28 in 1 : vector<8x64xf32>, vector<8x64xf32> -> vector<8x128xf32>
      %c0_16 = arith.constant 0 : index
      %c0_17 = arith.constant 0 : index
      %c0_18 = arith.constant 0 : index
      %30 = vector.load %arg6[%c0_16, %c0_17, %c0_18] : memref<1x8x128xf32, #tpu.memory_space<vmem>>, vector<1x8x128xf32>
      %31 = vector.shape_cast %30 : vector<1x8x128xf32> to vector<8x128xf32>
      %32 = vector.shape_cast %29 : vector<8x128xf32> to vector<1x8x128xf32>
      tpu.vector_store %arg6[%c0_16, %c0_17, %c0_18], %32 {strides = array<i32>} : memref<1x8x128xf32, #tpu.memory_space<vmem>>, vector<1x8x128xf32>,
    } else {
    }
    return
  }
  func.func @transform_0(%arg0: i32, %arg1: i32, %arg2: i32) -> (i32, i32, i32) {
    %c0_i32 = arith.constant 0 : i32
    %c0_i32_0 = arith.constant 0 : i32
    return %arg0, %arg1, %c0_i32 : i32, i32, i32
  }
  func.func @transform_1(%arg0: i32, %arg1: i32, %arg2: i32) -> (i32, i32, i32) {
    %c1_i32 = arith.constant 1 : i32
    %c0_i32 = arith.constant 0 : i32
    return %arg0, %arg2, %c1_i32 : i32, i32, i32
  }
  func.func @transform_2(%arg0: i32, %arg1: i32, %arg2: i32) -> (i32, i32, i32) {
    %c2_i32 = arith.constant 2 : i32
    %c0_i32 = arith.constant 0 : i32
    return %arg0, %arg2, %c2_i32 : i32, i32, i32
  }
  func.func @transform_3(%arg0: i32, %arg1: i32, %arg2: i32) -> (i32, i32, i32) {
    %c0_i32 = arith.constant 0 : i32
    %c0_i32_0 = arith.constant 0 : i32
    return %arg0, %arg1, %c0_i32 : i32, i32, i32
  }
}

</mosaic_0001>

<llo_original>
// kernel: _lambda_.3
$region0: #{_lambda_.3}
  #allocation0 [shape = 'u32[]', space=smem, size = 0x4, offset = 0x4, fixed_abs, tag = 'smem constant byte address 0x4 - core index']
  #allocation1 [shape = 'u32[144,128]{1,0:T(1,128)}', space=vmem, size = 0x12000, scoped, tag = 'internal scratch']
  %s0 = inlined_call_operand.hbm [shape: f32[16,128], index: 0, kind: input, shape index: {}]
  %s1 = inlined_call_operand.hbm [shape: f32[128,384], index: 1, kind: input, shape index: {}]
  %s2 = inlined_call_operand.vmem [shape: f32[1,384], index: 2, kind: input, shape index: {}]
  %s3 = inlined_call_operand.vmem [shape: f32[16,384], index: 3, kind: output, shape index: {}]
  %s4 = sld [smem:[#allocation0]]
  $region30: #{_lambda_.3} parent=0
    _
  %s6 = ssub.s32 1, %s4
  %s7 = scalar_select 0, %s6, %s4
  $region1: #{_lambda_.3} parent=0
    #allocation2 [shape = 'u8[8192]{0}', space=vmem, size = 0x2000, scoped, tag = 'input window, operand 0, single buffered']
    #allocation3 [shape = 's32[1]{0}', space=sflag, size = 0x4, scoped, tag = 'scoped memory for _lambda_.3']
    #allocation4 [shape = 'u8[196608]{0}', space=vmem, size = 0x30000, scoped, tag = 'input window, operand 1, single buffered']
    #allocation5 [shape = 's32[1]{0}', space=sflag, size = 0x4, scoped, tag = 'scoped memory for _lambda_.3']
    %8 = vsyncpa [#allocation3], 0
    %9 = vsyncpa [#allocation5], 0
    // Predicated region
    $region2: #{_lambda_.3} parent=1 // pred_check
      _
    $region3: #{_lambda_.3} parent=1 // pred_check_branch
      %11 = sbr.rel (0) target = $region5
    $region4: #{_lambda_.3} parent=1 // pred_region
      %s13 = ssub.s32 256, 256
      %14 = vsyncadd [#allocation3], %s13
      %s15 = sshll.u32 [#allocation2], 4
      %s16 = int_to_ptr.vmem [resolvable:$true] %s15
      %21 = dma.hbm_to_vmem [thread:$0]  %s0, 256, %s16, [#allocation3], 128, 128, 8
    $region5: #{_lambda_.3} parent=1 // pred_fallthru
      _
    // Predicated region
    $region6: #{_lambda_.3} parent=1 // pred_check
      _
    $region7: #{_lambda_.3} parent=1 // pred_check_branch
      %23 = sbr.rel (0) target = $region9
    $region8: #{_lambda_.3} parent=1 // pred_region
      %s25 = ssub.s32 6144, 6144
      %26 = vsyncadd [#allocation5], %s25
      %s27 = sshll.u32 [#allocation4], 4
      %s28 = int_to_ptr.vmem [resolvable:$true] %s27
      %33 = dma.hbm_to_vmem [thread:$0]  %s1, 6144, %s28, [#allocation5], 384, 384, 24
    $region9: #{_lambda_.3} parent=1 // pred_fallthru
      _
    // Predicated region
    $region10: #{_lambda_.3} parent=1 // pred_check
      _
    $region11: #{_lambda_.3} parent=1 // pred_check_branch
      %35 = sbr.rel (0) target = $region13
    $region12: #{_lambda_.3} parent=1 // pred_region
      _
    $region13: #{_lambda_.3} parent=1 // pred_fallthru
      _
    // Predicated region
    $region14: #{_lambda_.3} parent=1 // pred_check
      _
    $region15: #{_lambda_.3} parent=1 // pred_check_branch
      %37 = sbr.rel (0) target = $region17
    $region16: #{_lambda_.3} parent=1 // pred_region
      %38 = dma.done [#allocation3], 256
    $region17: #{_lambda_.3} parent=1 // pred_fallthru
      _
    // Predicated region
    $region18: #{_lambda_.3} parent=1 // pred_check
      _
    $region19: #{_lambda_.3} parent=1 // pred_check_branch
      %40 = sbr.rel (0) target = $region21
    $region20: #{_lambda_.3} parent=1 // pred_region
      %41 = dma.done [#allocation5], 6144
    $region21: #{_lambda_.3} parent=1 // pred_fallthru
      _
    %v42 = vld [vmem:[#allocation2] sm:$0xff]
    %v43 = vld [vmem:[#allocation2 + $0x8] sm:$0xff]
    %v44 = vld [vmem:[#allocation4] sm:$0xff]
    %v45 = vld [vmem:[#allocation4 + $0x8] sm:$0xff]
    %v46 = vld [vmem:[#allocation4 + $0x10] sm:$0xff]
    %v47 = vld [vmem:[#allocation4 + $0x18] sm:$0xff]
    %v48 = vld [vmem:[#allocation4 + $0x20] sm:$0xff]
    %v49 = vld [vmem:[#allocation4 + $0x28] sm:$0xff]
    %v50 = vld [vmem:[#allocation4 + $0x30] sm:$0xff]
    %v51 = vld [vmem:[#allocation4 + $0x38] sm:$0xff]
    %v52 = vld [vmem:[#allocation4 + $0x40] sm:$0xff]
    %v53 = vld [vmem:[#allocation4 + $0x48] sm:$0xff]
    %v54 = vld [vmem:[#allocation4 + $0x50] sm:$0xff]
    %v55 = vld [vmem:[#allocation4 + $0x58] sm:$0xff]
    %v56 = vld [vmem:[#allocation4 + $0x60] sm:$0xff]
    %v57 = vld [vmem:[#allocation4 + $0x68] sm:$0xff]
    %v58 = vld [vmem:[#allocation4 + $0x70] sm:$0xff]
    %v59 = vld [vmem:[#allocation4 + $0x78] sm:$0xff]
    %v60 = vld [vmem:[#allocation4 + $0x80] sm:$0xff]
    %v61 = vld [vmem:[#allocation4 + $0x88] sm:$0xff]
    %v62 = vld [vmem:[#allocation4 + $0x90] sm:$0xff]
    %v63 = vld [vmem:[#allocation4 + $0x98] sm:$0xff]
    %v64 = vld [vmem:[#allocation4 + $0xa0] sm:$0xff]
    %v65 = vld [vmem:[#allocation4 + $0xa8] sm:$0xff]
    %v66 = vld [vmem:[#allocation4 + $0xb0] sm:$0xff]
    %v67 = vld [vmem:[#allocation4 + $0xb8] sm:$0xff]
    %v68 = vld [vmem:[#allocation4 + $0xc0] sm:$0xff]
    %v69 = vld [vmem:[#allocation4 + $0xc8] sm:$0xff]
    %v70 = vld [vmem:[#allocation4 + $0xd0] sm:$0xff]
    %v71 = vld [vmem:[#allocation4 + $0xd8] sm:$0xff]
    %v72 = vld [vmem:[#allocation4 + $0xe0] sm:$0xff]
    %v73 = vld [vmem:[#allocation4 + $0xe8] sm:$0xff]
    %v74 = vld [vmem:[#allocation4 + $0xf0] sm:$0xff]
    %v75 = vld [vmem:[#allocation4 + $0xf8] sm:$0xff]
    %v76 = vld [vmem:[#allocation4 + $0x100] sm:$0xff]
    %v77 = vld [vmem:[#allocation4 + $0x108] sm:$0xff]
    %v78 = vld [vmem:[#allocation4 + $0x110] sm:$0xff]
    %v79 = vld [vmem:[#allocation4 + $0x118] sm:$0xff]
    %v80 = vld [vmem:[#allocation4 + $0x120] sm:$0xff]
    %v81 = vld [vmem:[#allocation4 + $0x128] sm:$0xff]
    %v82 = vld [vmem:[#allocation4 + $0x130] sm:$0xff]
    %v83 = vld [vmem:[#allocation4 + $0x138] sm:$0xff]
    %v84 = vld [vmem:[#allocation4 + $0x140] sm:$0xff]
    %v85 = vld [vmem:[#allocation4 + $0x148] sm:$0xff]
    %v86 = vld [vmem:[#allocation4 + $0x150] sm:$0xff]
    %v87 = vld [vmem:[#allocation4 + $0x158] sm:$0xff]
    %v88 = vld [vmem:[#allocation4 + $0x160] sm:$0xff]
    %v89 = vld [vmem:[#allocation4 + $0x168] sm:$0xff]
    %v90 = vld [vmem:[#allocation4 + $0x170] sm:$0xff]
    %v91 = vld [vmem:[#allocation4 + $0x178] sm:$0xff]
    %v92 = vld [vmem:[%s2] sm:$0x7]
    %v94 = vlaneseq
    %v95 = vshrl.u32 %v94, 7
    %v96 = vsub.s32 0, %v95
    %v97 = vrot.slane %v92, %v96
    %v98 = vlaneseq
    %v99 = vshrl.u32 %v98, 7
    %v100 = vsub.s32 1, %v99
    %v101 = vrot.slane %v92, %v100
    %v102 = vlaneseq
    %v103 = vshrl.u32 %v102, 7
    %v104 = vsub.s32 2, %v103
    %v105 = vrot.slane %v92, %v104
    %109 = vmatprep.subr.mxu0 %v90
    %110 = vmatpush1.msra.mxu0 %v89
    %111 = vmatprep.subr.mxu0 %v87
    %112 = vmatpush1.msra.mxu0 %v86
    %113 = vmatprep.subr.mxu0 %v84
    %114 = vmatpush1.msra.mxu0 %v83
    %115 = vmatprep.subr.mxu0 %v81
    %116 = vmatpush1.msra.mxu0 %v80
    %117 = vmatprep.subr.mxu0 %v78
    %118 = vmatpush1.msra.mxu0 %v77
    %119 = vmatprep.subr.mxu0 %v75
    %120 = vmatpush1.msra.mxu0 %v74
    %121 = vmatprep.subr.mxu0 %v72
    %122 = vmatpush1.msra.mxu0 %v71
    %123 = vmatprep.subr.mxu0 %v69
    %124 = vmatpush1.msra.mxu0 %v68
    %125 = vmatprep.subr.mxu0 %v66
    %126 = vmatpush1.msra.mxu0 %v65
    %127 = vmatprep.subr.mxu0 %v63
    %128 = vmatpush1.msra.mxu0 %v62
    %129 = vmatprep.subr.mxu0 %v60
    %130 = vmatpush1.msra.mxu0 %v59
    %131 = vmatprep.subr.mxu0 %v57
    %132 = vmatpush1.msra.mxu0 %v56
    %133 = vmatprep.subr.mxu0 %v54
    %134 = vmatpush1.msra.mxu0 %v53
    %135 = vmatprep.subr.mxu0 %v51
    %136 = vmatpush1.msra.mxu0 %v50
    %137 = vmatprep.subr.mxu0 %v48
    %138 = vmatpush1.msra.mxu0 %v47
    %139 = vmatprep.subr.mxu0 %v45
    %140 = vmatpush1.msra.mxu0 %v44
    %141 = vmatprep.subr.mxu0 0.0
    %142 = vmatpush2.msra.mxu0 0.0
    %143 = vmatprep.subr.mxu0 0.0
    %144 = vmatpush2.msra.mxu0 0.0
    %145 = vmatprep.subr.mxu0 0.0
    %146 = vmatpush2.msra.mxu0 0.0
    %147 = vmatprep.subr.mxu0 0.0
    %148 = vmatpush2.msra.mxu0 0.0
    %149 = vmatprep.subr.mxu0 0.0
    %150 = vmatpush2.msra.mxu0 0.0
    %151 = vmatprep.subr.mxu0 0.0
    %152 = vmatpush2.msra.mxu0 0.0
    %153 = vmatprep.subr.mxu0 0.0
    %154 = vmatpush2.msra.mxu0 0.0
    %155 = vmatprep.subr.mxu0 0.0
    %156 = vmatpush2.msra.mxu0 0.0
    %157 = vmatprep.subr.mxu0 0.0
    %158 = vmatpush2.msra.mxu0 0.0
    %159 = vmatprep.subr.mxu0 0.0
    %160 = vmatpush2.msra.mxu0 0.0
    %161 = vmatprep.subr.mxu0 0.0
    %162 = vmatpush2.msra.mxu0 0.0
    %163 = vmatprep.subr.mxu0 0.0
    %164 = vmatpush2.msra.mxu0 0.0
    %165 = vmatprep.subr.mxu0 0.0
    %166 = vmatpush2.msra.mxu0 0.0
    %167 = vmatprep.subr.mxu0 0.0
    %168 = vmatpush2.msra.mxu0 0.0
    %169 = vmatprep.subr.mxu0 0.0
    %170 = vmatpush2.msra.mxu0 0.0
    %171 = vmatprep.subr.mxu0 0.0
    %172 = vmatpush2.msra.mxu0 0.0
    %173 = vmatprep.mubr.f32.mxu0 0.0
    %174 = vmatmul.mubr.f32.gmra.mxu0 %v42
    %v175 = vpop.f32.mrf.mxu0
    %v176 = vadd.f32 %v97, %v175
    %v177 = vpop.f32.mrf.mxu0
    %v178 = vadd.f32 %v101, %v177
    %179 = vmatprep.mubr.f32.mxu0 0.0
    %180 = vmatmul.mubr.f32.gmra.mxu0 %v43
    %v181 = vpop.f32.mrf.mxu0
    %v182 = vadd.f32 %v97, %v181
    %v183 = vpop.f32.mrf.mxu0
    %v184 = vadd.f32 %v101, %v183
    %185 = vdwg.mxu0
    %186 = vmatprep.subr.mxu0 0.0
    %187 = vmatpush1.msra.mxu0 %v91
    %188 = vmatprep.subr.mxu0 0.0
    %189 = vmatpush1.msra.mxu0 %v88
    %190 = vmatprep.subr.mxu0 0.0
    %191 = vmatpush1.msra.mxu0 %v85
    %192 = vmatprep.subr.mxu0 0.0
    %193 = vmatpush1.msra.mxu0 %v82
    %194 = vmatprep.subr.mxu0 0.0
    %195 = vmatpush1.msra.mxu0 %v79
    %196 = vmatprep.subr.mxu0 0.0
    %197 = vmatpush1.msra.mxu0 %v76
    %198 = vmatprep.subr.mxu0 0.0
    %199 = vmatpush1.msra.mxu0 %v73
    %200 = vmatprep.subr.mxu0 0.0
    %201 = vmatpush1.msra.mxu0 %v70
    %202 = vmatprep.subr.mxu0 0.0
    %203 = vmatpush1.msra.mxu0 %v67
    %204 = vmatprep.subr.mxu0 0.0
    %205 = vmatpush1.msra.mxu0 %v64
    %206 = vmatprep.subr.mxu0 0.0
    %207 = vmatpush1.msra.mxu0 %v61
    %208 = vmatprep.subr.mxu0 0.0
    %209 = vmatpush1.msra.mxu0 %v58
    %210 = vmatprep.subr.mxu0 0.0
    %211 = vmatpush1.msra.mxu0 %v55
    %212 = vmatprep.subr.mxu0 0.0
    %213 = vmatpush1.msra.mxu0 %v52
    %214 = vmatprep.subr.mxu0 0.0
    %215 = vmatpush1.msra.mxu0 %v49
    %216 = vmatprep.subr.mxu0 0.0
    %217 = vmatpush1.msra.mxu0 %v46
    %218 = vmatprep.subr.mxu0 0.0
    %219 = vmatpush2.msra.mxu0 0.0
    %220 = vmatprep.subr.mxu0 0.0
    %221 = vmatpush2.msra.mxu0 0.0
    %222 = vmatprep.subr.mxu0 0.0
    %223 = vmatpush2.msra.mxu0 0.0
    %224 = vmatprep.subr.mxu0 0.0
    %225 = vmatpush2.msra.mxu0 0.0
    %226 = vmatprep.subr.mxu0 0.0
    %227 = vmatpush2.msra.mxu0 0.0
    %228 = vmatprep.subr.mxu0 0.0
    %229 = vmatpush2.msra.mxu0 0.0
    %230 = vmatprep.subr.mxu0 0.0
    %231 = vmatpush2.msra.mxu0 0.0
    %232 = vmatprep.subr.mxu0 0.0
    %233 = vmatpush2.msra.mxu0 0.0
    %234 = vmatprep.subr.mxu0 0.0
    %235 = vmatpush2.msra.mxu0 0.0
    %236 = vmatprep.subr.mxu0 0.0
    %237 = vmatpush2.msra.mxu0 0.0
    %238 = vmatprep.subr.mxu0 0.0
    %239 = vmatpush2.msra.mxu0 0.0
    %240 = vmatprep.subr.mxu0 0.0
    %241 = vmatpush2.msra.mxu0 0.0
    %242 = vmatprep.subr.mxu0 0.0
    %243 = vmatpush2.msra.mxu0 0.0
    %244 = vmatprep.subr.mxu0 0.0
    %245 = vmatpush2.msra.mxu0 0.0
    %246 = vmatprep.subr.mxu0 0.0
    %247 = vmatpush2.msra.mxu0 0.0
    %248 = vmatprep.subr.mxu0 0.0
    %249 = vmatpush2.msra.mxu0 0.0
    %250 = vmatprep.mubr.f32.mxu0 0.0
    %251 = vmatmul.mubr.f32.gmra.mxu0 %v42
    %v252 = vpop.f32.mrf.mxu0
    %v253 = vadd.f32 %v105, %v252
    %v254 = vpop.f32.mrf.mxu0
    %255 = vmatprep.mubr.f32.mxu0 0.0
    %256 = vmatmul.mubr.f32.gmra.mxu0 %v43
    %v257 = vpop.f32.mrf.mxu0
    %v258 = vadd.f32 %v105, %v257
    %v259 = vpop.f32.mrf.mxu0
    %260 = vdwg.mxu0
    %261 = vst [vmem:[%s3] sm:$0xff] %v176
    %262 = vst [vmem:[%s3 + $0x8] sm:$0xff] %v178
    %263 = vst [vmem:[%s3 + $0x10] sm:$0xff] %v253
    %264 = vst [vmem:[%s3 + $0x18] sm:$0xff] %v182
    %265 = vst [vmem:[%s3 + $0x20] sm:$0xff] %v184
    %266 = vst [vmem:[%s3 + $0x28] sm:$0xff] %v258
    // Predicated region
    $region22: #{_lambda_.3} parent=1 // pred_check
      _
    $region23: #{_lambda_.3} parent=1 // pred_check_branch
      %268 = sbr.rel (0) target = $region25
    $region24: #{_lambda_.3} parent=1 // pred_region
      _
    $region25: #{_lambda_.3} parent=1 // pred_fallthru
      _
    // Predicated region
    $region26: #{_lambda_.3} parent=1 // pred_check
      _
    $region27: #{_lambda_.3} parent=1 // pred_check_branch
      %270 = sbr.rel (0) target = $region29
    $region28: #{_lambda_.3} parent=1 // pred_region
      _
    $region29: #{_lambda_.3} parent=1 // pred_fallthru
      _
    %271 = vsyncpa [#allocation3], 1
    %272 = vsyncpa [#allocation5], 1

// kernel: _lambda_.5
$region0: #{_lambda_.5}
  #allocation0 [shape = 'u32[]', space=smem, size = 0x4, offset = 0x4, fixed_abs, tag = 'smem constant byte address 0x4 - core index']
  #allocation1 [shape = 'u32[144,128]{1,0:T(1,128)}', space=vmem, size = 0x12000, scoped, tag = 'internal scratch']
  %s0 = inlined_call_operand.vmem [shape: f32[16,128], index: 0, kind: input, shape index: {}]
  %s1 = inlined_call_operand.vmem [shape: f32[128,128], index: 1, kind: input, shape index: {}]
  %s2 = inlined_call_operand.vmem [shape: f32[1,128], index: 2, kind: input, shape index: {}]
  %s3 = inlined_call_operand.hbm [shape: f32[16,128], index: 3, kind: output, shape index: {}]
  %s4 = sld [smem:[#allocation0]]
  $region22: #{_lambda_.5} parent=0
    _
  %s6 = ssub.s32 1, %s4
  %s7 = scalar_select 0, %s6, %s4
  $region1: #{_lambda_.5} parent=0
    #allocation2 [shape = 'u8[8192]{0}', space=vmem, size = 0x2000, scoped, tag = 'output window, operand 0, single buffered']
    #allocation3 [shape = 's32[1]{0}', space=sflag, size = 0x4, scoped, tag = 'scoped memory for _lambda_.5']
    %8 = vsyncpa [#allocation3], 0
    // Predicated region
    $region2: #{_lambda_.5} parent=1 // pred_check
      _
    $region3: #{_lambda_.5} parent=1 // pred_check_branch
      %10 = sbr.rel (0) target = $region5
    $region4: #{_lambda_.5} parent=1 // pred_region
      _
    $region5: #{_lambda_.5} parent=1 // pred_fallthru
      _
    // Predicated region
    $region6: #{_lambda_.5} parent=1 // pred_check
      _
    $region7: #{_lambda_.5} parent=1 // pred_check_branch
      %12 = sbr.rel (0) target = $region9
    $region8: #{_lambda_.5} parent=1 // pred_region
      _
    $region9: #{_lambda_.5} parent=1 // pred_fallthru
      _
    // Predicated region
    $region10: #{_lambda_.5} parent=1 // pred_check
      _
    $region11: #{_lambda_.5} parent=1 // pred_check_branch
      %14 = sbr.rel (0) target = $region13
    $region12: #{_lambda_.5} parent=1 // pred_region
      _
    $region13: #{_lambda_.5} parent=1 // pred_fallthru
      _
    %v15 = vld [vmem:[%s0] sm:$0xff]
    %v16 = vld [vmem:[%s0 + $0x8] sm:$0xff]
    %v17 = vld [vmem:[%s1] sm:$0xff]
    %v18 = vld [vmem:[%s1 + $0x8] sm:$0xff]
    %v19 = vld [vmem:[%s1 + $0x10] sm:$0xff]
    %v20 = vld [vmem:[%s1 + $0x18] sm:$0xff]
    %v21 = vld [vmem:[%s1 + $0x20] sm:$0xff]
    %v22 = vld [vmem:[%s1 + $0x28] sm:$0xff]
    %v23 = vld [vmem:[%s1 + $0x30] sm:$0xff]
    %v24 = vld [vmem:[%s1 + $0x38] sm:$0xff]
    %v25 = vld [vmem:[%s1 + $0x40] sm:$0xff]
    %v26 = vld [vmem:[%s1 + $0x48] sm:$0xff]
    %v27 = vld [vmem:[%s1 + $0x50] sm:$0xff]
    %v28 = vld [vmem:[%s1 + $0x58] sm:$0xff]
    %v29 = vld [vmem:[%s1 + $0x60] sm:$0xff]
    %v30 = vld [vmem:[%s1 + $0x68] sm:$0xff]
    %v31 = vld [vmem:[%s1 + $0x70] sm:$0xff]
    %v32 = vld [vmem:[%s1 + $0x78] sm:$0xff]
    %v33 = vld [vmem:[%s2] sm:$0x1]
    %v35 = vlaneseq
    %v36 = vshrl.u32 %v35, 7
    %v37 = vsub.s32 0, %v36
    %v38 = vrot.slane %v33, %v37
    %40 = vmatprep.subr.mxu0 0.0
    %41 = vmatpush1.msra.mxu0 %v32
    %42 = vmatprep.subr.mxu0 0.0
    %43 = vmatpush1.msra.mxu0 %v31
    %44 = vmatprep.subr.mxu0 0.0
    %45 = vmatpush1.msra.mxu0 %v30
    %46 = vmatprep.subr.mxu0 0.0
    %47 = vmatpush1.msra.mxu0 %v29
    %48 = vmatprep.subr.mxu0 0.0
    %49 = vmatpush1.msra.mxu0 %v28
    %50 = vmatprep.subr.mxu0 0.0
    %51 = vmatpush1.msra.mxu0 %v27
    %52 = vmatprep.subr.mxu0 0.0
    %53 = vmatpush1.msra.mxu0 %v26
    %54 = vmatprep.subr.mxu0 0.0
    %55 = vmatpush1.msra.mxu0 %v25
    %56 = vmatprep.subr.mxu0 0.0
    %57 = vmatpush1.msra.mxu0 %v24
    %58 = vmatprep.subr.mxu0 0.0
    %59 = vmatpush1.msra.mxu0 %v23
    %60 = vmatprep.subr.mxu0 0.0
    %61 = vmatpush1.msra.mxu0 %v22
    %62 = vmatprep.subr.mxu0 0.0
    %63 = vmatpush1.msra.mxu0 %v21
    %64 = vmatprep.subr.mxu0 0.0
    %65 = vmatpush1.msra.mxu0 %v20
    %66 = vmatprep.subr.mxu0 0.0
    %67 = vmatpush1.msra.mxu0 %v19
    %68 = vmatprep.subr.mxu0 0.0
    %69 = vmatpush1.msra.mxu0 %v18
    %70 = vmatprep.subr.mxu0 0.0
    %71 = vmatpush1.msra.mxu0 %v17
    %72 = vmatprep.subr.mxu0 0.0
    %73 = vmatpush2.msra.mxu0 0.0
    %74 = vmatprep.subr.mxu0 0.0
    %75 = vmatpush2.msra.mxu0 0.0
    %76 = vmatprep.subr.mxu0 0.0
    %77 = vmatpush2.msra.mxu0 0.0
    %78 = vmatprep.subr.mxu0 0.0
    %79 = vmatpush2.msra.mxu0 0.0
    %80 = vmatprep.subr.mxu0 0.0
    %81 = vmatpush2.msra.mxu0 0.0
    %82 = vmatprep.subr.mxu0 0.0
    %83 = vmatpush2.msra.mxu0 0.0
    %84 = vmatprep.subr.mxu0 0.0
    %85 = vmatpush2.msra.mxu0 0.0
    %86 = vmatprep.subr.mxu0 0.0
    %87 = vmatpush2.msra.mxu0 0.0
    %88 = vmatprep.subr.mxu0 0.0
    %89 = vmatpush2.msra.mxu0 0.0
    %90 = vmatprep.subr.mxu0 0.0
    %91 = vmatpush2.msra.mxu0 0.0
    %92 = vmatprep.subr.mxu0 0.0
    %93 = vmatpush2.msra.mxu0 0.0
    %94 = vmatprep.subr.mxu0 0.0
    %95 = vmatpush2.msra.mxu0 0.0
    %96 = vmatprep.subr.mxu0 0.0
    %97 = vmatpush2.msra.mxu0 0.0
    %98 = vmatprep.subr.mxu0 0.0
    %99 = vmatpush2.msra.mxu0 0.0
    %100 = vmatprep.subr.mxu0 0.0
    %101 = vmatpush2.msra.mxu0 0.0
    %102 = vmatprep.subr.mxu0 0.0
    %103 = vmatpush2.msra.mxu0 0.0
    %104 = vmatprep.mubr.f32.mxu0 0.0
    %105 = vmatmul.mubr.f32.gmra.mxu0 %v15
    %v106 = vpop.f32.mrf.mxu0
    %v107 = vadd.f32 %v38, %v106
    %v108 = vpop.f32.mrf.mxu0
    %109 = vmatprep.mubr.f32.mxu0 0.0
    %110 = vmatmul.mubr.f32.gmra.mxu0 %v16
    %v111 = vpop.f32.mrf.mxu0
    %v112 = vadd.f32 %v38, %v111
    %v113 = vpop.f32.mrf.mxu0
    %114 = vdwg.mxu0
    %115 = vst [vmem:[#allocation2] sm:$0xff] %v107
    %116 = vst [vmem:[#allocation2 + $0x8] sm:$0xff] %v112
    // Predicated region
    $region14: #{_lambda_.5} parent=1 // pred_check
      _
    $region15: #{_lambda_.5} parent=1 // pred_check_branch
      %118 = sbr.rel (0) target = $region17
    $region16: #{_lambda_.5} parent=1 // pred_region
      %s120 = ssub.s32 256, 256
      %121 = vsyncadd [#allocation3], %s120
      %s122 = sshll.u32 [#allocation2], 4
      %s123 = int_to_ptr.vmem [resolvable:$true] %s122
      %128 = dma.vmem_to_hbm [thread:$0]  %s123, 256, %s3, [#allocation3], 128, 128, 8
    $region17: #{_lambda_.5} parent=1 // pred_fallthru
      _
    // Predicated region
    $region18: #{_lambda_.5} parent=1 // pred_check
      _
    $region19: #{_lambda_.5} parent=1 // pred_check_branch
      %130 = sbr.rel (0) target = $region21
    $region20: #{_lambda_.5} parent=1 // pred_region
      %131 = dma.done [#allocation3], 256
    $region21: #{_lambda_.5} parent=1 // pred_fallthru
      _
    %132 = vsyncpa [#allocation3], 1

// kernel: _lambda_.4
$region0: #{_lambda_.4}
  #allocation0 [shape = 'u32[]', space=smem, size = 0x4, offset = 0x4, fixed_abs, tag = 'smem constant byte address 0x4 - core index']
  #allocation1 [shape = 'u32[144,128]{1,0:T(1,128)}', space=vmem, size = 0x12000, scoped, tag = 'internal scratch']
  #allocation2 [shape = 'f32[2,8,1]{2,1,0:T(8,128)}', space=vmem, size = 0x2000, scoped, tag = 'scratch operand']
  #allocation3 [shape = 'f32[2,8,1]{2,1,0:T(8,128)}', space=vmem, size = 0x2000, scoped, tag = 'scratch operand']
  #allocation4 [shape = 'f32[2,8,64]{2,1,0:T(8,128)}', space=vmem, size = 0x2000, scoped, tag = 'scratch operand']
  %s0 = inlined_call_operand.vmem [shape: f32[2,8,384], index: 0, kind: input, shape index: {}, may-alias: {0,1,2}]
  %s1 = inlined_call_operand.vmem [shape: f32[2,8,384], index: 1, kind: input, shape index: {}, may-alias: {0,1,2}]
  %s2 = inlined_call_operand.vmem [shape: f32[2,8,384], index: 2, kind: input, shape index: {}, may-alias: {0,1,2}]
  %s3 = inlined_call_operand.vmem [shape: f32[2,8,128], index: 3, kind: output, shape index: {}]
  %s4 = sld [smem:[#allocation0]]
  $region57: #{_lambda_.4} parent=0
    _
  %s6 = ssub.s32 1, %s4
  %s7 = scalar_select 0, %s6, %s4
  loop: start=0, step=1, limit=4
  $region2: #{_lambda_.4} parent=0 // loop_pre_header
    _
  $region3: #{_lambda_.4} parent=0 // loop_header
    %s9 = sphi 0, %s13
    %p10 = scmp.ge.s32.totalorder %s9, 4
    %s16 = sphi 0, %s35
    %s17 = sphi 0, %s31
    %s18 = sphi 0, %s27
    %s19 = sphi 0, %s16
    %s20 = sphi 0, %s17
    %s21 = sphi 0, %s18
    %s22 = sphi 0, %s19
    %s23 = sphi 0, %s20
    %s24 = sphi 0, %s21
    %s40 = sphi 0, %s42
    %s43 = sphi 0, %s40
    %s44 = sphi 0, %s43
    %s60 = sphi 0, %s44
    %s68 = sphi 0, %s70
    %s71 = sphi 0, %s68
    %s72 = sphi 0, %s71
    %s88 = sphi 0, %s72
    %s96 = sphi 0, %s98
    %s99 = sphi 0, %s96
    %s100 = sphi 0, %s99
    %s116 = sphi 0, %s100
    %s124 = sphi 0, %s126
    %s127 = sphi 0, %s124
    %s128 = sphi 0, %s127
    %s144 = sphi 0, %s128
  $region4: #{_lambda_.4} parent=0 // loop_header_branch
    %12 = sbr.rel (%p10) target = $region8
  $region5: #{_lambda_.4} parent=0 // loop_body
    %s14 = ssub.s32 %s9, 1
    %s15 = ssub.s32 %s9, 2
    %s25 = sadd.s32 1, %s18
    %p26 = scmp.ge.s32.totalorder %s25, 1
    %s27 = scalar_select %p26, 0, %s25
    %s28 = sadd.s32 1, %s17
    %s29 = scalar_select %p26, %s28, %s17
    %p30 = scmp.ge.s32.totalorder %s29, 1
    %s31 = scalar_select %p30, 0, %s29
    %s32 = sadd.s32 1, %s16
    %s33 = scalar_select %p30, %s32, %s16
    %p34 = scmp.ge.s32.totalorder %s33, 2
    %s35 = scalar_select %p34, 0, %s33
    %s36 = ssub.s32 %s16, %s35
    %s37 = ssub.s32 %s17, %s31
    %s38 = sor.u32 %s36, %s37
    %p39 = scmp.eq.s32.totalorder %s38, 0
    %s41 = sadd.s32 %s40, 1
    %s42 = scalar_select %p39, %s40, %s41
    %p45 = pneg %p39
    %p46 = scmp.eq.s32.totalorder %s9, 1
    %p47 = por %p45, %p46
    %p48 = scmp.ne.s32.totalorder %s40, %s43
    %p49 = scmp.eq.s32.totalorder %s9, 0
    %p50 = por %p48, %p49
    %p51 = scmp.ne.s32.totalorder %s40, %s43
    %p52 = scmp.eq.s32.totalorder %s14, 1
    %p53 = por %p51, %p52
    %p54 = scmp.ne.s32.totalorder %s43, %s44
    %p55 = scmp.eq.s32.totalorder %s14, 0
    %p56 = por %p54, %p55
    %p57 = scmp.ne.s32.totalorder %s43, %s44
    %p58 = scmp.eq.s32.totalorder %s15, 1
    %p59 = por %p57, %p58
    %p61 = scmp.ne.s32.totalorder %s44, %s60
    %p62 = scmp.eq.s32.totalorder %s15, 0
    %p63 = por %p61, %p62
    %s64 = ssub.s32 %s16, %s35
    %s65 = ssub.s32 %s18, %s27
    %s66 = sor.u32 %s64, %s65
    %p67 = scmp.eq.s32.totalorder %s66, 0
    %s69 = sadd.s32 %s68, 1
    %s70 = scalar_select %p67, %s68, %s69
    %p73 = pneg %p67
    %p74 = scmp.eq.s32.totalorder %s9, 1
    %p75 = por %p73, %p74
    %p76 = scmp.ne.s32.totalorder %s68, %s71
    %p77 = scmp.eq.s32.totalorder %s9, 0
    %p78 = por %p76, %p77
    %p79 = scmp.ne.s32.totalorder %s68, %s71
    %p80 = scmp.eq.s32.totalorder %s14, 1
    %p81 = por %p79, %p80
    %p82 = scmp.ne.s32.totalorder %s71, %s72
    %p83 = scmp.eq.s32.totalorder %s14, 0
    %p84 = por %p82, %p83
    %p85 = scmp.ne.s32.totalorder %s71, %s72
    %p86 = scmp.eq.s32.totalorder %s15, 1
    %p87 = por %p85, %p86
    %p89 = scmp.ne.s32.totalorder %s72, %s88
    %p90 = scmp.eq.s32.totalorder %s15, 0
    %p91 = por %p89, %p90
    %s92 = ssub.s32 %s16, %s35
    %s93 = ssub.s32 %s18, %s27
    %s94 = sor.u32 %s92, %s93
    %p95 = scmp.eq.s32.totalorder %s94, 0
    %s97 = sadd.s32 %s96, 1
    %s98 = scalar_select %p95, %s96, %s97
    %p101 = pneg %p95
    %p102 = scmp.eq.s32.totalorder %s9, 1
    %p103 = por %p101, %p102
    %p104 = scmp.ne.s32.totalorder %s96, %s99
    %p105 = scmp.eq.s32.totalorder %s9, 0
    %p106 = por %p104, %p105
    %p107 = scmp.ne.s32.totalorder %s96, %s99
    %p108 = scmp.eq.s32.totalorder %s14, 1
    %p109 = por %p107, %p108
    %p110 = scmp.ne.s32.totalorder %s99, %s100
    %p111 = scmp.eq.s32.totalorder %s14, 0
    %p112 = por %p110, %p111
    %p113 = scmp.ne.s32.totalorder %s99, %s100
    %p114 = scmp.eq.s32.totalorder %s15, 1
    %p115 = por %p113, %p114
    %p117 = scmp.ne.s32.totalorder %s100, %s116
    %p118 = scmp.eq.s32.totalorder %s15, 0
    %p119 = por %p117, %p118
    %s120 = ssub.s32 %s16, %s35
    %s121 = ssub.s32 %s17, %s31
    %s122 = sor.u32 %s120, %s121
    %p123 = scmp.eq.s32.totalorder %s122, 0
    %s125 = sadd.s32 %s124, 1
    %s126 = scalar_select %p123, %s124, %s125
    %p129 = pneg %p123
    %p130 = scmp.eq.s32.totalorder %s9, 1
    %p131 = por %p129, %p130
    %p132 = scmp.ne.s32.totalorder %s124, %s127
    %p133 = scmp.eq.s32.totalorder %s9, 0
    %p134 = por %p132, %p133
    %p135 = scmp.ne.s32.totalorder %s124, %s127
    %p136 = scmp.eq.s32.totalorder %s14, 1
    %p137 = por %p135, %p136
    %p138 = scmp.ne.s32.totalorder %s127, %s128
    %p139 = scmp.eq.s32.totalorder %s14, 0
    %p140 = por %p138, %p139
    %p141 = scmp.ne.s32.totalorder %s127, %s128
    %p142 = scmp.eq.s32.totalorder %s15, 1
    %p143 = por %p141, %p142
    %p145 = scmp.ne.s32.totalorder %s128, %s144
    %p146 = scmp.eq.s32.totalorder %s15, 0
    %p147 = por %p145, %p146
    %p148 = scmp.le.s32.totalorder 1, %s9
    %p149 = scmp.lt.s32.totalorder %s9, 3
    %p150 = pnand %p148, %p149
    %p151 = pneg %p150
    // Predicated region
    $region9: #{_lambda_.4} parent=5 // pred_check
      _
    $region10: #{_lambda_.4} parent=5 // pred_check_branch
      %153 = sbr.rel (%p150) target = $region12
    $region11: #{_lambda_.4} parent=5 // pred_region
      %s154 = ssub.s32 %s9, 1
    $region12: #{_lambda_.4} parent=5 // pred_fallthru
      _
    %p155 = scmp.lt.s32.totalorder %s9, 2
    // Predicated region
    $region13: #{_lambda_.4} parent=5 // pred_check
      %p156 = pneg %p155
    $region14: #{_lambda_.4} parent=5 // pred_check_branch
      %158 = sbr.rel (%p156) target = $region16
    $region15: #{_lambda_.4} parent=5 // pred_region
      // Predicated region
      $region17: #{_lambda_.4} parent=15 // pred_check
        %p159 = pneg %p50
      $region18: #{_lambda_.4} parent=15 // pred_check_branch
        %161 = sbr.rel (%p159) target = $region20
      $region19: #{_lambda_.4} parent=15 // pred_region
        %p162 = scmp.lt.s32.totalorder %s16, 1
        %s163 = scalar_select %p162, %s16, 1
        %p164 = scmp.lt.s32.totalorder %s17, 0
        %s165 = scalar_select %p164, %s17, 0
        %s166 = smul.addr %s165, 3
        %s167 = smul.addr %s163, 3
        %s168 = sadd.s32 %s166, %s167
        %s169 = smul.addr %s168, 8
        %s170 = scalar_lea.vmem %s0, %s169
      $region20: #{_lambda_.4} parent=15 // pred_fallthru
        _
      // Predicated region
      $region21: #{_lambda_.4} parent=15 // pred_check
        %p171 = pneg %p78
      $region22: #{_lambda_.4} parent=15 // pred_check_branch
        %173 = sbr.rel (%p171) target = $region24
      $region23: #{_lambda_.4} parent=15 // pred_region
        %p174 = scmp.lt.s32.totalorder %s16, 1
        %s175 = scalar_select %p174, %s16, 1
        %p176 = scmp.lt.s32.totalorder %s18, 0
        %s177 = scalar_select %p176, %s18, 0
        %s178 = smul.addr %s177, 3
        %s179 = sadd.s32 1, %s178
        %s180 = smul.addr %s175, 3
        %s181 = sadd.s32 %s179, %s180
        %s182 = smul.addr %s181, 8
        %s183 = scalar_lea.vmem %s1, %s182
      $region24: #{_lambda_.4} parent=15 // pred_fallthru
        _
      // Predicated region
      $region25: #{_lambda_.4} parent=15 // pred_check
        %p184 = pneg %p106
      $region26: #{_lambda_.4} parent=15 // pred_check_branch
        %186 = sbr.rel (%p184) target = $region28
      $region27: #{_lambda_.4} parent=15 // pred_region
        %p187 = scmp.lt.s32.totalorder %s16, 1
        %s188 = scalar_select %p187, %s16, 1
        %p189 = scmp.lt.s32.totalorder %s18, 0
        %s190 = scalar_select %p189, %s18, 0
        %s191 = smul.addr %s190, 3
        %s192 = sadd.s32 2, %s191
        %s193 = smul.addr %s188, 3
        %s194 = sadd.s32 %s192, %s193
        %s195 = smul.addr %s194, 8
        %s196 = scalar_lea.vmem %s2, %s195
      $region28: #{_lambda_.4} parent=15 // pred_fallthru
        _
    $region16: #{_lambda_.4} parent=5 // pred_fallthru
      _
    %p197 = scmp.le.s32.totalorder 1, %s9
    %p198 = scmp.lt.s32.totalorder %s9, 3
    %p199 = pnand %p197, %p198
    %p200 = pneg %p199
    // Predicated region
    $region29: #{_lambda_.4} parent=5 // pred_check
      _
    $region30: #{_lambda_.4} parent=5 // pred_check_branch
      %202 = sbr.rel (%p199) target = $region32
    $region31: #{_lambda_.4} parent=5 // pred_region
      %s203 = ssub.s32 %s9, 1
      %p204 = scmp.lt.s32.totalorder %s19, 1
      %s205 = scalar_select %p204, %s19, 1
      %p206 = scmp.lt.s32.totalorder %s20, 0
      %s207 = scalar_select %p206, %s20, 0
      %s208 = smul.addr %s207, 3
      %s209 = smul.addr %s205, 3
      %s210 = sadd.s32 %s208, %s209
      %s211 = smul.addr %s210, 8
      %s212 = scalar_lea.vmem %s0, %s211
      %p213 = pneg %p56
      %p214 = pneg %p53
      %p215 = scmp.lt.s32.totalorder %s19, 1
      %s216 = scalar_select %p215, %s19, 1
      %p217 = scmp.lt.s32.totalorder %s21, 0
      %s218 = scalar_select %p217, %s21, 0
      %s219 = smul.addr %s218, 3
      %s220 = sadd.s32 1, %s219
      %s221 = smul.addr %s216, 3
      %s222 = sadd.s32 %s220, %s221
      %s223 = smul.addr %s222, 8
      %s224 = scalar_lea.vmem %s1, %s223
      %p225 = pneg %p84
      %p226 = pneg %p81
      %p227 = scmp.lt.s32.totalorder %s19, 1
      %s228 = scalar_select %p227, %s19, 1
      %p229 = scmp.lt.s32.totalorder %s21, 0
      %s230 = scalar_select %p229, %s21, 0
      %s231 = smul.addr %s230, 3
      %s232 = sadd.s32 2, %s231
      %s233 = smul.addr %s228, 3
      %s234 = sadd.s32 %s232, %s233
      %s235 = smul.addr %s234, 8
      %s236 = scalar_lea.vmem %s2, %s235
      %p237 = pneg %p112
      %p238 = pneg %p109
      %p239 = pneg %p140
      %p240 = pneg %p137
      %p241 = scmp.lt.s32.totalorder %s19, 1
      %s242 = scalar_select %p241, %s19, 1
      %p243 = scmp.lt.s32.totalorder %s20, 0
      %s244 = scalar_select %p243, %s20, 0
      %s245 = sadd.s32 %s244, %s242
      %s246 = smul.addr %s245, 8
      %s247 = scalar_lea.vmem %s3, %s246
      %p248 = scmp.lt.s32.totalorder %s19, 1
      %s249 = scalar_select %p248, %s19, 1
      %p250 = scmp.lt.s32.totalorder %s20, 0
      %s251 = scalar_select %p250, %s20, 0
      %s252 = smul.addr %s251, 3
      %s253 = smul.addr %s249, 3
      %s254 = sadd.s32 %s252, %s253
      %s255 = smul.addr %s254, 8
      %s256 = scalar_lea.vmem %s0, %s255
      %p257 = scmp.lt.s32.totalorder %s19, 1
      %s258 = scalar_select %p257, %s19, 1
      %p259 = scmp.lt.s32.totalorder %s21, 0
      %s260 = scalar_select %p259, %s21, 0
      %s261 = smul.addr %s260, 3
      %s262 = sadd.s32 1, %s261
      %s263 = smul.addr %s258, 3
      %s264 = sadd.s32 %s262, %s263
      %s265 = smul.addr %s264, 8
      %s266 = scalar_lea.vmem %s1, %s265
      %p267 = scmp.lt.s32.totalorder %s19, 1
      %s268 = scalar_select %p267, %s19, 1
      %p269 = scmp.lt.s32.totalorder %s21, 0
      %s270 = scalar_select %p269, %s21, 0
      %s271 = smul.addr %s270, 3
      %s272 = sadd.s32 2, %s271
      %s273 = smul.addr %s268, 3
      %s274 = sadd.s32 %s272, %s273
      %s275 = smul.addr %s274, 8
      %s276 = scalar_lea.vmem %s2, %s275
      %p277 = scmp.lt.s32.totalorder %s19, 1
      %s278 = scalar_select %p277, %s19, 1
      %p279 = scmp.lt.s32.totalorder %s20, 0
      %s280 = scalar_select %p279, %s20, 0
      %s281 = sadd.s32 %s280, %s278
      %s282 = smul.addr %s281, 8
      %s283 = scalar_lea.vmem %s3, %s282
      %p284 = scmp.eq.s32.totalorder %s21, 0
      // Predicated region
      $region33: #{_lambda_.4} parent=31 // pred_check
        %p285 = pneg %p284
      $region34: #{_lambda_.4} parent=31 // pred_check_branch
        %287 = sbr.rel (%p285) target = $region36
      $region35: #{_lambda_.4} parent=31 // pred_region
        %vm288 = vcmask 7168
        %289 = vst.msk [vmem:[#allocation2] sm:$0xff] %vm288, -inf
        %290 = vst.msk [vmem:[#allocation2 + $0x8] sm:$0xff] %vm288, -inf
        %291 = vst.msk [vmem:[#allocation3] sm:$0xff] %vm288, 0.0
        %292 = vst.msk [vmem:[#allocation3 + $0x8] sm:$0xff] %vm288, 0.0
        %vm293 = vcmask 523264
        %294 = vst.msk [vmem:[#allocation4] sm:$0xff] %vm293, 0.0
        %295 = vst.msk [vmem:[#allocation4 + $0x8] sm:$0xff] %vm293, 0.0
      $region36: #{_lambda_.4} parent=31 // pred_fallthru
        _
      %s296 = smul.u32 %s21, 8
      %s297 = sadd.s32 %s296, 7
      %s298 = smul.u32 %s20, 8
      %p299 = scmp.gt.s32.totalorder %s297, %s298
      %p300 = scmp.eq.s32.totalorder %s20, 0
      %p301 = por %p299, %p300
      // Predicated region
      $region37: #{_lambda_.4} parent=31 // pred_check
        %p302 = pneg %p301
      $region38: #{_lambda_.4} parent=31 // pred_check_branch
        %304 = sbr.rel (%p302) target = $region40
      $region39: #{_lambda_.4} parent=31 // pred_region
        %v305 = vlaneseq
        %v306 = vshrl.u32 %v305, 7
        %v307 = vstv %s298
        %v308 = vadd.s32 %v307, %v306
        %v309 = vlaneseq
        %v310 = vand.u32 %v309, 127
        %v311 = vstv %s296
        %v312 = vadd.s32 %v311, %v310
        %vm313 = vcmp.le.s32.totalorder %v312, %v308
        %v314 = vld [vmem:[%s256] sm:$0xff]
        %v315 = vld [vmem:[%s266] sm:$0xff]
        %v316 = vld [vmem:[%s276] sm:$0xff]
        %vm317 = vcmask 523264
        %v319 = vsel %vm317, %v314, 0
        %v322 = vsel %vm317, %v315, 0
        %324 = vmatprep.subr.mxu0 0.0
        %325 = vmatpush1.xpose.msra.mxu0 0.0
        %326 = vmatprep.subr.mxu0 0.0
        %327 = vmatpush1.xpose.msra.mxu0 0.0
        %328 = vmatprep.subr.mxu0 0.0
        %329 = vmatpush1.xpose.msra.mxu0 0.0
        %330 = vmatprep.subr.mxu0 0.0
        %331 = vmatpush1.xpose.msra.mxu0 0.0
        %332 = vmatprep.subr.mxu0 0.0
        %333 = vmatpush1.xpose.msra.mxu0 0.0
        %334 = vmatprep.subr.mxu0 0.0
        %335 = vmatpush1.xpose.msra.mxu0 0.0
        %336 = vmatprep.subr.mxu0 0.0
        %337 = vmatpush1.xpose.msra.mxu0 0.0
        %338 = vmatprep.subr.mxu0 0.0
        %339 = vmatpush1.xpose.msra.mxu0 0.0
        %340 = vmatprep.subr.mxu0 0.0
        %341 = vmatpush1.xpose.msra.mxu0 0.0
        %342 = vmatprep.subr.mxu0 0.0
        %343 = vmatpush1.xpose.msra.mxu0 0.0
        %344 = vmatprep.subr.mxu0 0.0
        %345 = vmatpush1.xpose.msra.mxu0 0.0
        %346 = vmatprep.subr.mxu0 0.0
        %347 = vmatpush1.xpose.msra.mxu0 0.0
        %348 = vmatprep.subr.mxu0 0.0
        %349 = vmatpush1.xpose.msra.mxu0 0.0
        %350 = vmatprep.subr.mxu0 0.0
        %351 = vmatpush1.xpose.msra.mxu0 0.0
        %352 = vmatprep.subr.mxu0 0.0
        %353 = vmatpush1.xpose.msra.mxu0 0.0
        %354 = vmatprep.subr.mxu0 0.0
        %355 = vmatpush1.xpose.msra.mxu0 %v322
        %356 = vmatprep.subr.mxu0 0.0
        %357 = vmatpush2.xpose.msra.mxu0 0.0
        %358 = vmatprep.subr.mxu0 0.0
        %359 = vmatpush2.xpose.msra.mxu0 0.0
        %360 = vmatprep.subr.mxu0 0.0
        %361 = vmatpush2.xpose.msra.mxu0 0.0
        %362 = vmatprep.subr.mxu0 0.0
        %363 = vmatpush2.xpose.msra.mxu0 0.0
        %364 = vmatprep.subr.mxu0 0.0
        %365 = vmatpush2.xpose.msra.mxu0 0.0
        %366 = vmatprep.subr.mxu0 0.0
        %367 = vmatpush2.xpose.msra.mxu0 0.0
        %368 = vmatprep.subr.mxu0 0.0
        %369 = vmatpush2.xpose.msra.mxu0 0.0
        %370 = vmatprep.subr.mxu0 0.0
        %371 = vmatpush2.xpose.msra.mxu0 0.0
        %372 = vmatprep.subr.mxu0 0.0
        %373 = vmatpush2.xpose.msra.mxu0 0.0
        %374 = vmatprep.subr.mxu0 0.0
        %375 = vmatpush2.xpose.msra.mxu0 0.0
        %376 = vmatprep.subr.mxu0 0.0
        %377 = vmatpush2.xpose.msra.mxu0 0.0
        %378 = vmatprep.subr.mxu0 0.0
        %379 = vmatpush2.xpose.msra.mxu0 0.0
        %380 = vmatprep.subr.mxu0 0.0
        %381 = vmatpush2.xpose.msra.mxu0 0.0
        %382 = vmatprep.subr.mxu0 0.0
        %383 = vmatpush2.xpose.msra.mxu0 0.0
        %384 = vmatprep.subr.mxu0 0.0
        %385 = vmatpush2.xpose.msra.mxu0 0.0
        %386 = vmatprep.subr.mxu0 0.0
        %387 = vmatpush2.xpose.msra.mxu0 0.0
        %388 = vmatprep.mubr.f32.mxu0 0.0
        %389 = vmatmul.mubr.f32.gmra.mxu0 %v319
        %v390 = vpop.f32.mrf.mxu0
        %v391 = vadd.f32 0.0, %v390
        %v392 = vpop.f32.mrf.mxu0
        %393 = vdwg.mxu0
        %v394 = vsel %vm313, -1e+09, %v391
        %v395 = vld [vmem:[#allocation2] sm:$0xff]
        %vm396 = vcmask 64512
        %v397 = vsel %vm396, %v394, -inf
        %398 = vmax.xlane.f32.xlu0 %v397
        %v399 = vpop.xlane.xlu0 %398
        %v400 = vmax.f32 %v395, %v399
        %v401 = vsub.f32 %v395, %v400
        %v402 = vmul.f32 %v401, 1.442695
        %v403 = vpow.pop %v402
        %405 = vset.pattern.permute.xlu0 0
        %406 = vperm.xlu0 %405, %v400
        %v407 = vpop.permute.xlu0 %406
        %v409 = vsub.f32 %v394, %v407
        %v410 = vmul.f32 %v409, 1.442695
        %v411 = vpow.pop %v410
        %v412 = vld [vmem:[#allocation3] sm:$0xff]
        %v413 = vmul.f32 %v403, %v412
        %v414 = vsel %vm396, %v411, 0.0
        %415 = vadd.xlane.f32.xlu0 %v414
        %v416 = vpop.xlane.xlu0 %415
        %v417 = vadd.f32 %v413, %v416
        %vm418 = vcmask 7168
        %419 = vst.msk [vmem:[#allocation3] sm:$0xff] %vm418, %v417
        %v420 = vld [vmem:[#allocation4] sm:$0xff]
        %422 = vset.pattern.permute.xlu0 0
        %423 = vperm.xlu0 %422, %v403
        %v424 = vpop.permute.xlu0 %423
        %v426 = vmul.f32 %v424, %v420
        %v428 = vsel %vm396, %v411, 0
        %430 = vmatprep.subr.mxu0 0.0
        %431 = vmatpush1.msra.mxu0 0.0
        %432 = vmatprep.subr.mxu0 0.0
        %433 = vmatpush1.msra.mxu0 0.0
        %434 = vmatprep.subr.mxu0 0.0
        %435 = vmatpush1.msra.mxu0 0.0
        %436 = vmatprep.subr.mxu0 0.0
        %437 = vmatpush1.msra.mxu0 0.0
        %438 = vmatprep.subr.mxu0 0.0
        %439 = vmatpush1.msra.mxu0 0.0
        %440 = vmatprep.subr.mxu0 0.0
        %441 = vmatpush1.msra.mxu0 0.0
        %442 = vmatprep.subr.mxu0 0.0
        %443 = vmatpush1.msra.mxu0 0.0
        %444 = vmatprep.subr.mxu0 0.0
        %445 = vmatpush1.msra.mxu0 0.0
        %446 = vmatprep.subr.mxu0 0.0
        %447 = vmatpush1.msra.mxu0 0.0
        %448 = vmatprep.subr.mxu0 0.0
        %449 = vmatpush1.msra.mxu0 0.0
        %450 = vmatprep.subr.mxu0 0.0
        %451 = vmatpush1.msra.mxu0 0.0
        %452 = vmatprep.subr.mxu0 0.0
        %453 = vmatpush1.msra.mxu0 0.0
        %454 = vmatprep.subr.mxu0 0.0
        %455 = vmatpush1.msra.mxu0 0.0
        %456 = vmatprep.subr.mxu0 0.0
        %457 = vmatpush1.msra.mxu0 0.0
        %458 = vmatprep.subr.mxu0 0.0
        %459 = vmatpush1.msra.mxu0 0.0
        %460 = vmatprep.subr.mxu0 0.0
        %461 = vmatpush1.msra.mxu0 %v316
        %462 = vmatprep.subr.mxu0 0.0
        %463 = vmatpush2.msra.mxu0 0.0
        %464 = vmatprep.subr.mxu0 0.0
        %465 = vmatpush2.msra.mxu0 0.0
        %466 = vmatprep.subr.mxu0 0.0
        %467 = vmatpush2.msra.mxu0 0.0
        %468 = vmatprep.subr.mxu0 0.0
        %469 = vmatpush2.msra.mxu0 0.0
        %470 = vmatprep.subr.mxu0 0.0
        %471 = vmatpush2.msra.mxu0 0.0
        %472 = vmatprep.subr.mxu0 0.0
        %473 = vmatpush2.msra.mxu0 0.0
        %474 = vmatprep.subr.mxu0 0.0
        %475 = vmatpush2.msra.mxu0 0.0
        %476 = vmatprep.subr.mxu0 0.0
        %477 = vmatpush2.msra.mxu0 0.0
        %478 = vmatprep.subr.mxu0 0.0
        %479 = vmatpush2.msra.mxu0 0.0
        %480 = vmatprep.subr.mxu0 0.0
        %481 = vmatpush2.msra.mxu0 0.0
        %482 = vmatprep.subr.mxu0 0.0
        %483 = vmatpush2.msra.mxu0 0.0
        %484 = vmatprep.subr.mxu0 0.0
        %485 = vmatpush2.msra.mxu0 0.0
        %486 = vmatprep.subr.mxu0 0.0
        %487 = vmatpush2.msra.mxu0 0.0
        %488 = vmatprep.subr.mxu0 0.0
        %489 = vmatpush2.msra.mxu0 0.0
        %490 = vmatprep.subr.mxu0 0.0
        %491 = vmatpush2.msra.mxu0 0.0
        %492 = vmatprep.subr.mxu0 0.0
        %493 = vmatpush2.msra.mxu0 0.0
        %494 = vmatprep.mubr.f32.mxu0 0.0
        %495 = vmatmul.mubr.f32.gmra.mxu0 %v428
        %v496 = vpop.f32.mrf.mxu0
        %v497 = vadd.f32 0.0, %v496
        %v498 = vpop.f32.mrf.mxu0
        %499 = vdwg.mxu0
        %v500 = vadd.f32 %v426, %v497
        %501 = vst.msk [vmem:[#allocation4] sm:$0xff] %vm317, %v500
        %502 = vst.msk [vmem:[#allocation2] sm:$0xff] %vm418, %v400
        %503 = vrot.lane.b32.xlu0 %v314, 64
        %v504 = vpop.permute.xlu0 %503
        %505 = vrot.lane.b32.xlu0 %v315, 64
        %v506 = vpop.permute.xlu0 %505
        %v507 = vsel %vm317, %v504, 0
        %v509 = vsel %vm317, %v506, 0
        %511 = vmatprep.subr.mxu0 0.0
        %512 = vmatpush1.xpose.msra.mxu0 0.0
        %513 = vmatprep.subr.mxu0 0.0
        %514 = vmatpush1.xpose.msra.mxu0 0.0
        %515 = vmatprep.subr.mxu0 0.0
        %516 = vmatpush1.xpose.msra.mxu0 0.0
        %517 = vmatprep.subr.mxu0 0.0
        %518 = vmatpush1.xpose.msra.mxu0 0.0
        %519 = vmatprep.subr.mxu0 0.0
        %520 = vmatpush1.xpose.msra.mxu0 0.0
        %521 = vmatprep.subr.mxu0 0.0
        %522 = vmatpush1.xpose.msra.mxu0 0.0
        %523 = vmatprep.subr.mxu0 0.0
        %524 = vmatpush1.xpose.msra.mxu0 0.0
        %525 = vmatprep.subr.mxu0 0.0
        %526 = vmatpush1.xpose.msra.mxu0 0.0
        %527 = vmatprep.subr.mxu0 0.0
        %528 = vmatpush1.xpose.msra.mxu0 0.0
        %529 = vmatprep.subr.mxu0 0.0
        %530 = vmatpush1.xpose.msra.mxu0 0.0
        %531 = vmatprep.subr.mxu0 0.0
        %532 = vmatpush1.xpose.msra.mxu0 0.0
        %533 = vmatprep.subr.mxu0 0.0
        %534 = vmatpush1.xpose.msra.mxu0 0.0
        %535 = vmatprep.subr.mxu0 0.0
        %536 = vmatpush1.xpose.msra.mxu0 0.0
        %537 = vmatprep.subr.mxu0 0.0
        %538 = vmatpush1.xpose.msra.mxu0 0.0
        %539 = vmatprep.subr.mxu0 0.0
        %540 = vmatpush1.xpose.msra.mxu0 0.0
        %541 = vmatprep.subr.mxu0 0.0
        %542 = vmatpush1.xpose.msra.mxu0 %v509
        %543 = vmatprep.subr.mxu0 0.0
        %544 = vmatpush2.xpose.msra.mxu0 0.0
        %545 = vmatprep.subr.mxu0 0.0
        %546 = vmatpush2.xpose.msra.mxu0 0.0
        %547 = vmatprep.subr.mxu0 0.0
        %548 = vmatpush2.xpose.msra.mxu0 0.0
        %549 = vmatprep.subr.mxu0 0.0
        %550 = vmatpush2.xpose.msra.mxu0 0.0
        %551 = vmatprep.subr.mxu0 0.0
        %552 = vmatpush2.xpose.msra.mxu0 0.0
        %553 = vmatprep.subr.mxu0 0.0
        %554 = vmatpush2.xpose.msra.mxu0 0.0
        %555 = vmatprep.subr.mxu0 0.0
        %556 = vmatpush2.xpose.msra.mxu0 0.0
        %557 = vmatprep.subr.mxu0 0.0
        %558 = vmatpush2.xpose.msra.mxu0 0.0
        %559 = vmatprep.subr.mxu0 0.0
        %560 = vmatpush2.xpose.msra.mxu0 0.0
        %561 = vmatprep.subr.mxu0 0.0
        %562 = vmatpush2.xpose.msra.mxu0 0.0
        %563 = vmatprep.subr.mxu0 0.0
        %564 = vmatpush2.xpose.msra.mxu0 0.0
        %565 = vmatprep.subr.mxu0 0.0
        %566 = vmatpush2.xpose.msra.mxu0 0.0
        %567 = vmatprep.subr.mxu0 0.0
        %568 = vmatpush2.xpose.msra.mxu0 0.0
        %569 = vmatprep.subr.mxu0 0.0
        %570 = vmatpush2.xpose.msra.mxu0 0.0
        %571 = vmatprep.subr.mxu0 0.0
        %572 = vmatpush2.xpose.msra.mxu0 0.0
        %573 = vmatprep.subr.mxu0 0.0
        %574 = vmatpush2.xpose.msra.mxu0 0.0
        %575 = vmatprep.mubr.f32.mxu0 0.0
        %576 = vmatmul.mubr.f32.gmra.mxu0 %v507
        %v577 = vpop.f32.mrf.mxu0
        %v578 = vadd.f32 0.0, %v577
        %v579 = vpop.f32.mrf.mxu0
        %580 = vdwg.mxu0
        %v581 = vsel %vm313, -1e+09, %v578
        %s582 = scalar_lea.vmem [#allocation2], 8
        %v583 = vld [vmem:[%s582] sm:$0xff]
        %v584 = vsel %vm396, %v581, -inf
        %585 = vmax.xlane.f32.xlu0 %v584
        %v586 = vpop.xlane.xlu0 %585
        %v587 = vmax.f32 %v583, %v586
        %v588 = vsub.f32 %v583, %v587
        %v589 = vmul.f32 %v588, 1.442695
        %v590 = vpow.pop %v589
        %592 = vset.pattern.permute.xlu0 0
        %593 = vperm.xlu0 %592, %v587
        %v594 = vpop.permute.xlu0 %593
        %v596 = vsub.f32 %v581, %v594
        %v597 = vmul.f32 %v596, 1.442695
        %v598 = vpow.pop %v597
        %s599 = scalar_lea.vmem [#allocation3], 8
        %v600 = vld [vmem:[%s599] sm:$0xff]
        %v601 = vmul.f32 %v590, %v600
        %v602 = vsel %vm396, %v598, 0.0
        %603 = vadd.xlane.f32.xlu0 %v602
        %v604 = vpop.xlane.xlu0 %603
        %v605 = vadd.f32 %v601, %v604
        %606 = vst.msk [vmem:[%s599] sm:$0xff] %vm418, %v605
        %s607 = scalar_lea.vmem [#allocation4], 8
        %v608 = vld [vmem:[%s607] sm:$0xff]
        %610 = vset.pattern.permute.xlu0 0
        %611 = vperm.xlu0 %610, %v590
        %v612 = vpop.permute.xlu0 %611
        %v614 = vmul.f32 %v612, %v608
        %616 = vrot.lane.b32.xlu0 %v316, 64
        %v617 = vpop.permute.xlu0 %616
        %v620 = vsel %vm396, %v598, 0
        %622 = vmatprep.subr.mxu0 0.0
        %623 = vmatpush1.msra.mxu0 0.0
        %624 = vmatprep.subr.mxu0 0.0
        %625 = vmatpush1.msra.mxu0 0.0
        %626 = vmatprep.subr.mxu0 0.0
        %627 = vmatpush1.msra.mxu0 0.0
        %628 = vmatprep.subr.mxu0 0.0
        %629 = vmatpush1.msra.mxu0 0.0
        %630 = vmatprep.subr.mxu0 0.0
        %631 = vmatpush1.msra.mxu0 0.0
        %632 = vmatprep.subr.mxu0 0.0
        %633 = vmatpush1.msra.mxu0 0.0
        %634 = vmatprep.subr.mxu0 0.0
        %635 = vmatpush1.msra.mxu0 0.0
        %636 = vmatprep.subr.mxu0 0.0
        %637 = vmatpush1.msra.mxu0 0.0
        %638 = vmatprep.subr.mxu0 0.0
        %639 = vmatpush1.msra.mxu0 0.0
        %640 = vmatprep.subr.mxu0 0.0
        %641 = vmatpush1.msra.mxu0 0.0
        %642 = vmatprep.subr.mxu0 0.0
        %643 = vmatpush1.msra.mxu0 0.0
        %644 = vmatprep.subr.mxu0 0.0
        %645 = vmatpush1.msra.mxu0 0.0
        %646 = vmatprep.subr.mxu0 0.0
        %647 = vmatpush1.msra.mxu0 0.0
        %648 = vmatprep.subr.mxu0 0.0
        %649 = vmatpush1.msra.mxu0 0.0
        %650 = vmatprep.subr.mxu0 0.0
        %651 = vmatpush1.msra.mxu0 0.0
        %652 = vmatprep.subr.mxu0 0.0
        %653 = vmatpush1.msra.mxu0 %v617
        %654 = vmatprep.subr.mxu0 0.0
        %655 = vmatpush2.msra.mxu0 0.0
        %656 = vmatprep.subr.mxu0 0.0
        %657 = vmatpush2.msra.mxu0 0.0
        %658 = vmatprep.subr.mxu0 0.0
        %659 = vmatpush2.msra.mxu0 0.0
        %660 = vmatprep.subr.mxu0 0.0
        %661 = vmatpush2.msra.mxu0 0.0
        %662 = vmatprep.subr.mxu0 0.0
        %663 = vmatpush2.msra.mxu0 0.0
        %664 = vmatprep.subr.mxu0 0.0
        %665 = vmatpush2.msra.mxu0 0.0
        %666 = vmatprep.subr.mxu0 0.0
        %667 = vmatpush2.msra.mxu0 0.0
        %668 = vmatprep.subr.mxu0 0.0
        %669 = vmatpush2.msra.mxu0 0.0
        %670 = vmatprep.subr.mxu0 0.0
        %671 = vmatpush2.msra.mxu0 0.0
        %672 = vmatprep.subr.mxu0 0.0
        %673 = vmatpush2.msra.mxu0 0.0
        %674 = vmatprep.subr.mxu0 0.0
        %675 = vmatpush2.msra.mxu0 0.0
        %676 = vmatprep.subr.mxu0 0.0
        %677 = vmatpush2.msra.mxu0 0.0
        %678 = vmatprep.subr.mxu0 0.0
        %679 = vmatpush2.msra.mxu0 0.0
        %680 = vmatprep.subr.mxu0 0.0
        %681 = vmatpush2.msra.mxu0 0.0
        %682 = vmatprep.subr.mxu0 0.0
        %683 = vmatpush2.msra.mxu0 0.0
        %684 = vmatprep.subr.mxu0 0.0
        %685 = vmatpush2.msra.mxu0 0.0
        %686 = vmatprep.mubr.f32.mxu0 0.0
        %687 = vmatmul.mubr.f32.gmra.mxu0 %v620
        %v688 = vpop.f32.mrf.mxu0
        %v689 = vadd.f32 0.0, %v688
        %v690 = vpop.f32.mrf.mxu0
        %691 = vdwg.mxu0
        %v692 = vadd.f32 %v614, %v689
        %693 = vst.msk [vmem:[%s607] sm:$0xff] %vm317, %v692
        %694 = vst.msk [vmem:[%s582] sm:$0xff] %vm418, %v587
      $region40: #{_lambda_.4} parent=31 // pred_fallthru
        _
      // Predicated region
      $region41: #{_lambda_.4} parent=31 // pred_check
        %p695 = pneg %p284
      $region42: #{_lambda_.4} parent=31 // pred_check_branch
        %697 = sbr.rel (%p695) target = $region44
      $region43: #{_lambda_.4} parent=31 // pred_region
        %v698 = vld [vmem:[#allocation3] sm:$0xff]
        %v699 = vrcp.pop %v698
        %v700 = vld [vmem:[#allocation4] sm:$0xff]
        %702 = vset.pattern.permute.xlu0 0
        %703 = vperm.xlu0 %702, %v699
        %v704 = vpop.permute.xlu0 %703
        %v706 = vmul.f32 %v700, %v704
        %s707 = scalar_lea.vmem [#allocation3], 8
        %v708 = vld [vmem:[%s707] sm:$0xff]
        %v709 = vrcp.pop %v708
        %s710 = scalar_lea.vmem [#allocation4], 8
        %v711 = vld [vmem:[%s710] sm:$0xff]
        %713 = vset.pattern.permute.xlu0 0
        %714 = vperm.xlu0 %713, %v709
        %v715 = vpop.permute.xlu0 %714
        %v717 = vmul.f32 %v711, %v715
        %719 = vrot.lane.b32.xlu0 %v717, 64
        %v720 = vpop.permute.xlu0 %719
        %vm722 = vcmask 523264
        %v723 = vsel %vm722, %v706, %v720
        %724 = vst [vmem:[%s283] sm:$0xff] %v723
      $region44: #{_lambda_.4} parent=31 // pred_fallthru
        _
      %p725 = scmp.lt.s32.totalorder %s19, 1
      %s726 = scalar_select %p725, %s19, 1
      %p727 = scmp.lt.s32.totalorder %s20, 0
      %s728 = scalar_select %p727, %s20, 0
      %s729 = sadd.s32 %s728, %s726
      %s730 = smul.addr %s729, 8
      %s731 = scalar_lea.vmem %s3, %s730
      // Predicated region
      $region45: #{_lambda_.4} parent=31 // pred_check
        %p732 = pneg %p137
      $region46: #{_lambda_.4} parent=31 // pred_check_branch
        %734 = sbr.rel (%p732) target = $region48
      $region47: #{_lambda_.4} parent=31 // pred_region
        _
      $region48: #{_lambda_.4} parent=31 // pred_fallthru
        _
    $region32: #{_lambda_.4} parent=5 // pred_fallthru
      _
    %p735 = scmp.le.s32.totalorder 2, %s9
    // Predicated region
    $region49: #{_lambda_.4} parent=5 // pred_check
      %p736 = pneg %p735
    $region50: #{_lambda_.4} parent=5 // pred_check_branch
      %738 = sbr.rel (%p736) target = $region52
    $region51: #{_lambda_.4} parent=5 // pred_region
      %s739 = ssub.s32 %s9, 2
      // Predicated region
      $region53: #{_lambda_.4} parent=51 // pred_check
        %p740 = pneg %p143
      $region54: #{_lambda_.4} parent=51 // pred_check_branch
        %742 = sbr.rel (%p740) target = $region56
      $region55: #{_lambda_.4} parent=51 // pred_region
        %p743 = scmp.lt.s32.totalorder %s22, 1
        %s744 = scalar_select %p743, %s22, 1
        %p745 = scmp.lt.s32.totalorder %s23, 0
        %s746 = scalar_select %p745, %s23, 0
        %s747 = sadd.s32 %s746, %s744
        %s748 = smul.addr %s747, 8
        %s749 = scalar_lea.vmem %s3, %s748
      $region56: #{_lambda_.4} parent=51 // pred_fallthru
        _
    $region52: #{_lambda_.4} parent=5 // pred_fallthru
      _
  $region6: #{_lambda_.4} parent=0 // loop_footer
    %s13 = sadd.s32 1, %s9
  $region7: #{_lambda_.4} parent=0 // loop_footer_branch
    %8 = sbr.rel target = $region3
  $region8: #{_lambda_.4} parent=0 // loop_exit
    _

</llo_original>
